<compile_context>
chip_gen: v5e
topology: v5e:2x2
jax: 0.10.0
libtpu: 0.0.40
codegen_flags: <defaults>
</compile_context>

<pallas_src>
import functools

import jax
import jax.numpy as jnp
from jax.experimental import pallas as pl
from jax.experimental.pallas import tpu as pltpu


# -----------------------------------------------------------------------------
# Helpers
# -----------------------------------------------------------------------------
def _round_up(n, m):
    return ((n + m - 1) // m) * m


def _pad2(x, rows, cols):
    pr, pc = rows - x.shape[0], cols - x.shape[1]
    if pr or pc:
        x = jnp.pad(x, ((0, pr), (0, pc)))
    return x


# -----------------------------------------------------------------------------
# Pallas kernels
# -----------------------------------------------------------------------------
def _rowtile_matmul_kernel(x_ref, w_ref, o_ref):
    # o = X_tile @ W   (bf16 inputs, f32 accumulate)
    o_ref[...] = jnp.dot(
        x_ref[...], w_ref[...], preferred_element_type=jnp.float32
    ).astype(o_ref.dtype)


def _spmm_kernel(a_ref, xw_ref, b_ref, o_ref, acc_ref, *, relu):
    # Tiled A_hat @ XW with f32 accumulator; bias + ReLU fused at the last
    # reduction step.  Grid = (row_tiles, k_tiles), k last.
    k = pl.program_id(1)

    @pl.when(k == 0)
    def _():
        acc_ref[...] = jnp.zeros_like(acc_ref)

    acc_ref[...] += jnp.dot(
        a_ref[...], xw_ref[...], preferred_element_type=jnp.float32
    )

    @pl.when(k == pl.num_programs(1) - 1)
    def _():
        h = acc_ref[...] + b_ref[...]
        if relu:
            h = jnp.maximum(h, 0.0)
        o_ref[...] = h.astype(o_ref.dtype)


def _proj_head_kernel(z_ref, w1_ref, b1_ref, w2_ref, b2_ref, o_ref):
    # Fused Linear -> ReLU -> Linear on a row tile (all weights resident).
    h = jnp.dot(z_ref[...], w1_ref[...], preferred_element_type=jnp.float32)
    h = jnp.maximum(h + b1_ref[...], 0.0)
    out = jnp.dot(
        h.astype(jnp.bfloat16), w2_ref[...], preferred_element_type=jnp.float32
    )
    o_ref[...] = (out + b2_ref[...]).astype(o_ref.dtype)


def _add_pool_kernel(p_ref, z_ref, o_ref, acc_ref):
    # g = P @ Z  (sum pool via one-hot assignment), K-tiled reduction over nodes.
    k = pl.program_id(0)

    @pl.when(k == 0)
    def _():
        acc_ref[...] = jnp.zeros_like(acc_ref)

    acc_ref[...] += jnp.dot(
        p_ref[...], z_ref[...], preferred_element_type=jnp.float32
    )

    @pl.when(k == pl.num_programs(0) - 1)
    def _():
        o_ref[...] = acc_ref[...].astype(o_ref.dtype)


# -----------------------------------------------------------------------------
# Pallas wrappers
# -----------------------------------------------------------------------------
# NOTE on tile sizes: 128 is the safe MXU-aligned choice on v5e/v6e/v7x and
# keeps per-step VMEM tiny (well under v5e's 16 MiB scoped default and v7x's
# 64 MiB physical).  On v6e with large N, bump tm/tk toward 256-512.
_TM = 128
_TK = 128


def rowtile_matmul(x, w, *, tm=_TM):
    """[N, K] @ [K, H] -> [N, H] f32, rows tiled, W resident, bf16 MXU inputs."""
    n, k = x.shape
    h = w.shape[1]
    np_ = _round_up(n, tm)
    xp = _pad2(x, np_, k).astype(jnp.bfloat16)
    wb = w.astype(jnp.bfloat16)
    out = pl.pallas_call(
        _rowtile_matmul_kernel,
        out_shape=jax.ShapeDtypeStruct((np_, h), jnp.float32),
        grid=(np_ // tm,),
        in_specs=[
            pl.BlockSpec((tm, k), lambda i: (i, 0)),
            pl.BlockSpec((k, h), lambda i: (0, 0)),
        ],
        out_specs=pl.BlockSpec((tm, h), lambda i: (i, 0)),
        compiler_params=pltpu.CompilerParams(
            dimension_semantics=("parallel",)),
    )(xp, wb)
    return out[:n]


def spmm_bias_relu(a_bf16, xw, b, *, tm=_TM, tk=_TK, relu=True):
    """relu(A_hat @ XW + b); A tiled over (rows, K), reduction axis last."""
    n, h = xw.shape
    np_ = _round_up(n, max(tm, tk))
    a_p = _pad2(a_bf16, np_, np_)
    xw_p = _pad2(xw, np_, h).astype(jnp.bfloat16)
    b2d = b.reshape(1, h).astype(jnp.float32)
    kernel = functools.partial(_spmm_kernel, relu=relu)
    out = pl.pallas_call(
        kernel,
        out_shape=jax.ShapeDtypeStruct((np_, h), jnp.float32),
        grid=(np_ // tm, np_ // tk),
        in_specs=[
            pl.BlockSpec((tm, tk), lambda i, k: (i, k)),
            pl.BlockSpec((tk, h), lambda i, k: (k, 0)),
            pl.BlockSpec((1, h), lambda i, k: (0, 0)),
        ],
        out_specs=pl.BlockSpec((tm, h), lambda i, k: (i, 0)),
        scratch_shapes=[pltpu.VMEM((tm, h), jnp.float32)],
        compiler_params=pltpu.CompilerParams(
            dimension_semantics=("parallel", "arbitrary"),
            vmem_limit_bytes=32 * 1024 * 1024),
    )(a_p, xw_p, b2d)
    return out[:n]


def projection_head(z, w1, b1, w2, b2, *, tm=_TM):
    """Fused Linear->ReLU->Linear, row-tiled, weights resident."""
    n, h = z.shape
    np_ = _round_up(n, tm)
    zp = _pad2(z, np_, h).astype(jnp.bfloat16)
    out = pl.pallas_call(
        _proj_head_kernel,
        out_shape=jax.ShapeDtypeStruct((np_, h), jnp.float32),
        grid=(np_ // tm,),
        in_specs=[
            pl.BlockSpec((tm, h), lambda i: (i, 0)),
            pl.BlockSpec((h, h), lambda i: (0, 0)),
            pl.BlockSpec((1, h), lambda i: (0, 0)),
            pl.BlockSpec((h, h), lambda i: (0, 0)),
            pl.BlockSpec((1, h), lambda i: (0, 0)),
        ],
        out_specs=pl.BlockSpec((tm, h), lambda i: (i, 0)),
        compiler_params=pltpu.CompilerParams(
            dimension_semantics=("parallel",)),
    )(zp, w1.astype(jnp.bfloat16), b1.reshape(1, h).astype(jnp.float32),
      w2.astype(jnp.bfloat16), b2.reshape(1, h).astype(jnp.float32))
    return out[:n]


def add_pool(assign_onehot, z, *, tk=_TK):
    """global_add_pool on concatenated features: [G, N] @ [N, Ht] -> [G, Ht]."""
    g, n = assign_onehot.shape
    ht = z.shape[1]
    gp = _round_up(g, 8)
    np_ = _round_up(n, tk)
    p = _pad2(assign_onehot, gp, np_).astype(jnp.bfloat16)
    zp = _pad2(z, np_, ht).astype(jnp.bfloat16)
    out = pl.pallas_call(
        _add_pool_kernel,
        out_shape=jax.ShapeDtypeStruct((gp, ht), jnp.float32),
        grid=(np_ // tk,),
        in_specs=[
            pl.BlockSpec((gp, tk), lambda k: (0, k)),
            pl.BlockSpec((tk, ht), lambda k: (k, 0)),
        ],
        out_specs=pl.BlockSpec((gp, ht), lambda k: (0, 0)),
        scratch_shapes=[pltpu.VMEM((gp, ht), jnp.float32)],
        compiler_params=pltpu.CompilerParams(
            dimension_semantics=("arbitrary",),
            vmem_limit_bytes=32 * 1024 * 1024),
    )(p, zp)
    return out[:g]


# -----------------------------------------------------------------------------
# Graph / normalization glue (plain JAX)
# -----------------------------------------------------------------------------
def dense_norm_adj(edge_index, edge_weight, n):
    # A_hat[dst, src] = w, + self loops, symmetric normalization (PyG gcn_norm).
    src, dst = edge_index[0], edge_index[1]
    A = jnp.zeros((n, n), jnp.float32).at[dst, src].add(
        edge_weight.astype(jnp.float32))
    A = A + jnp.eye(n, dtype=jnp.float32)
    deg = A.sum(axis=1)
    dinv = jnp.where(deg > 0, jax.lax.rsqrt(deg), 0.0)
    return A * dinv[:, None] * dinv[None, :]


def batch_norm_train(z, gamma, beta, eps=1e-5):
    # BatchNorm1d forward in training mode (batch statistics, biased variance).
    mean = jnp.mean(z, axis=0, keepdims=True)
    var = jnp.mean(jnp.square(z - mean), axis=0, keepdims=True)
    return (z - mean) * jax.lax.rsqrt(var + eps) * gamma[None, :] + beta[None, :]


# -----------------------------------------------------------------------------
# GConv forward
# -----------------------------------------------------------------------------
def gconv_forward(params, x, edge_index, edge_attr, batch, num_graphs,
                  prompt=None):
    if prompt is not None:
        x = x + prompt
    n = x.shape[0]
    A = dense_norm_adj(edge_index, edge_attr, n).astype(jnp.bfloat16)

    z = x
    zs = []
    for W, b, gamma, beta in zip(params["W"], params["b"],
                                 params["gamma"], params["beta"]):
        xw = rowtile_matmul(z, W)                    # X @ W   (hoisted, Pallas)
        h = spmm_bias_relu(A, xw, b, relu=True)      # relu(A_hat @ XW + b)
        z = batch_norm_train(h, gamma, beta)         # BatchNorm1d (JAX glue)
        zs.append(z)

    zp = projection_head(z, params["PW1"], params["Pb1"],
                         params["PW2"], params["Pb2"])
    zs.append(zp)

    z_cat = jnp.concatenate(zs, axis=1)              # [N, H*(L+1)]
    P = jax.nn.one_hot(batch, num_graphs, dtype=jnp.float32).T   # [G, N]
    g_cat = add_pool(P, z_cat)                       # [G, H*(L+1)]
    return z_cat, g_cat


# -----------------------------------------------------------------------------
# Pure-JAX reference (same bf16-in / f32-accumulate math, no Pallas)
# -----------------------------------------------------------------------------
def _mm_ref(a, b):
    return jnp.dot(a.astype(jnp.bfloat16), b.astype(jnp.bfloat16),
                   preferred_element_type=jnp.float32)


def gconv_ref(params, x, edge_index, edge_attr, batch, num_graphs,
              prompt=None):
    if prompt is not None:
        x = x + prompt
    n = x.shape[0]
    A = dense_norm_adj(edge_index, edge_attr, n)
    z = x
    zs = []
    for W, b, gamma, beta in zip(params["W"], params["b"],
                                 params["gamma"], params["beta"]):
        xw = _mm_ref(z, W)
        h = jnp.maximum(_mm_ref(A, xw) + b[None, :], 0.0)
        z = batch_norm_train(h, gamma, beta)
        zs.append(z)
    h = jnp.maximum(_mm_ref(z, params["PW1"]) + params["Pb1"][None, :], 0.0)
    zp = _mm_ref(h, params["PW2"]) + params["Pb2"][None, :]
    zs.append(zp)
    z_cat = jnp.concatenate(zs, axis=1)
    P = jax.nn.one_hot(batch, num_graphs, dtype=jnp.float32).T
    g_cat = _mm_ref(P, z_cat)
    return z_cat, g_cat


# -----------------------------------------------------------------------------
# Main
# -----------------------------------------------------------------------------
if __name__ == "__main__":
    key = jax.random.PRNGKey(0)
    N, F, H, L, G = 256, 128, 128, 2, 2        # nodes, in-dim, hidden, layers, graphs
    npg = N // G

    (k_x, k_w1, k_w2, k_ew, k_p, k_b, k_g, k_be,
     k_pw1, k_pw2, k_pb1, k_pb2) = jax.random.split(key, 12)

    # node features, graph assignment
    x = jax.random.normal(k_x, (N, F), dtype=jnp.float32)
    batch = jnp.repeat(jnp.arange(G, dtype=jnp.int32), npg)

    # ring edges (both directions) inside each graph
    src, dst = [], []
    for gi in range(G):
        off = gi * npg
        for i in range(npg):
            a_n, b_n = off + i, off + (i + 1) % npg
            src += [a_n, b_n]
            dst += [b_n, a_n]
    edge_index = jnp.array([src, dst], dtype=jnp.int32)          # [2, E]
    edge_attr = jax.random.uniform(k_ew, (edge_index.shape[1],),
                                   minval=0.5, maxval=1.5, dtype=jnp.float32)

    # GConv parameters (fresh-init style)
    kb1, kb2 = jax.random.split(k_b)
    kg1, kg2 = jax.random.split(k_g)
    ke1, ke2 = jax.random.split(k_be)
    params = {
        "W": [jax.random.normal(k_w1, (F, H), jnp.float32) * 0.1,
              jax.random.normal(k_w2, (H, H), jnp.float32) * 0.1],
        "b": [jax.random.normal(kb1, (H,), jnp.float32) * 0.05,
              jax.random.normal(kb2, (H,), jnp.float32) * 0.05],
        "gamma": [1.0 + 0.1 * jax.random.normal(kg1, (H,), jnp.float32),
                  1.0 + 0.1 * jax.random.normal(kg2, (H,), jnp.float32)],
        "beta": [0.1 * jax.random.normal(ke1, (H,), jnp.float32),
                 0.1 * jax.random.normal(ke2, (H,), jnp.float32)],
        "PW1": jax.random.normal(k_pw1, (H, H), jnp.float32) * 0.1,
        "Pb1": jax.random.normal(k_pb1, (H,), jnp.float32) * 0.05,
        "PW2": jax.random.normal(k_pw2, (H, H), jnp.float32) * 0.1,
        "Pb2": jax.random.normal(k_pb2, (H,), jnp.float32) * 0.05,
    }
    prompt = jax.random.normal(k_p, (1, F), dtype=jnp.float32) * 0.1

    gconv_jit = jax.jit(gconv_forward, static_argnames=("num_graphs",))
    z, g = jax.block_until_ready(
        gconv_jit(params, x, edge_index, edge_attr, batch,
                  num_graphs=G, prompt=prompt))

    # correctness check against a same-math pure-JAX reference
    z_ref, g_ref = gconv_ref(params, x, edge_index, edge_attr, batch, G,
                             prompt=prompt)
    assert z.shape == (N, H * (L + 1)) and g.shape == (G, H * (L + 1))
    assert jnp.allclose(z, z_ref, rtol=2e-2, atol=2e-2)
    assert jnp.allclose(g, g_ref, rtol=2e-2, atol=2e-2)
    assert bool(jnp.all(jnp.isfinite(z))) and bool(jnp.all(jnp.isfinite(g)))

    print("KERNEL_OK")
</pallas_src>

<mosaic_0001>
module attributes {stable_mosaic.version = 11 : i64} {
  func.func @_rowtile_matmul_kernel(%arg0: i32, %arg1: memref<128x128xbf16, #tpu.memory_space<vmem>>, %arg2: memref<128x128xbf16, #tpu.memory_space<vmem>>, %arg3: memref<128x128xf32, #tpu.memory_space<vmem>>) attributes {dimension_semantics = [#tpu.dimension_semantics<parallel>], iteration_bounds = array<i64: 2>, scalar_prefetch = 0 : i64, scratch_operands = 0 : i64, tpu.core_type = #tpu.core_type<tc>, window_params = [{transform_indices = @transform_0, window_bounds = array<i64: 128, 128>}, {pipeline_mode = #tpu.pipeline_mode<synchronous>, transform_indices = @transform_1, window_bounds = array<i64: 128, 128>}, {transform_indices = @transform_2, window_bounds = array<i64: 128, 128>}]} {
    %c0 = arith.constant 0 : index
    %c0_0 = arith.constant 0 : index
    %0 = vector.load %arg1[%c0, %c0_0] : memref<128x128xbf16, #tpu.memory_space<vmem>>, vector<128x128xbf16>
    %c0_1 = arith.constant 0 : index
    %c0_2 = arith.constant 0 : index
    %1 = vector.load %arg2[%c0_1, %c0_2] : memref<128x128xbf16, #tpu.memory_space<vmem>>, vector<128x128xbf16>
    %cst = arith.constant dense<0.000000e+00> : vector<128x128xf32>
    %2 = tpu.matmul %0, %1, %cst {dimension_numbers = #tpu.dot_dimension_numbers<[1], [0], [0], [1], [0, 0, 1, 1], [], []>} : vector<128x128xbf16>, vector<128x128xbf16>, vector<128x128xf32> -> vector<128x128xf32>
    %c0_3 = arith.constant 0 : index
    %c0_4 = arith.constant 0 : index
    %3 = vector.load %arg3[%c0_3, %c0_4] : memref<128x128xf32, #tpu.memory_space<vmem>>, vector<128x128xf32>
    tpu.vector_store %arg3[%c0_3, %c0_4], %2 {strides = array<i32>} : memref<128x128xf32, #tpu.memory_space<vmem>>, vector<128x128xf32>,
    return
  }
  func.func @transform_0(%arg0: i32) -> (i32, i32) {
    %c0_i32 = arith.constant 0 : i32
    %c0_i32_0 = arith.constant 0 : i32
    return %arg0, %c0_i32 : i32, i32
  }
  func.func @transform_1(%arg0: i32) -> (i32, i32) {
    %c0_i32 = arith.constant 0 : i32
    %c0_i32_0 = arith.constant 0 : i32
    %c0_i32_1 = arith.constant 0 : i32
    return %c0_i32, %c0_i32_0 : i32, i32
  }
  func.func @transform_2(%arg0: i32) -> (i32, i32) {
    %c0_i32 = arith.constant 0 : i32
    %c0_i32_0 = arith.constant 0 : i32
    return %arg0, %c0_i32 : i32, i32
  }
}

module attributes {stable_mosaic.version = 11 : i64} {
  func.func @_spmm_kernel(%arg0: i32, %arg1: i32, %arg2: memref<128x128xbf16, #tpu.memory_space<vmem>>, %arg3: memref<128x128xbf16, #tpu.memory_space<vmem>>, %arg4: memref<1x128xf32, #tpu.memory_space<vmem>>, %arg5: memref<128x128xf32, #tpu.memory_space<vmem>>, %arg6: memref<128x128xf32, #tpu.memory_space<vmem>>) attributes {dimension_semantics = [#tpu.dimension_semantics<parallel>, #tpu.dimension_semantics<arbitrary>], iteration_bounds = array<i64: 2, 2>, scalar_prefetch = 0 : i64, scratch_operands = 1 : i64, tpu.core_type = #tpu.core_type<tc>, window_params = [{transform_indices = @transform_0, window_bounds = array<i64: 128, 128>}, {transform_indices = @transform_1, window_bounds = array<i64: 128, 128>}, {pipeline_mode = #tpu.pipeline_mode<synchronous>, transform_indices = @transform_2, window_bounds = array<i64: 1, 128>}, {transform_indices = @transform_3, window_bounds = array<i64: 128, 128>}]} {
    %c0_i32 = arith.constant 0 : i32
    %0 = arith.cmpi eq, %arg1, %c0_i32 : i32
    %1 = arith.extui %0 : i1 to i32
    %c0_i32_0 = arith.constant 0 : i32
    %2 = arith.cmpi ne, %1, %c0_i32_0 : i32
    scf.if %2 {
      %cst_9 = arith.constant 0.000000e+00 : f32
      %12 = vector.broadcast %cst_9 : f32 to vector<128x128xf32>
      %c0_10 = arith.constant 0 : index
      %c0_11 = arith.constant 0 : index
      %13 = vector.load %arg6[%c0_10, %c0_11] : memref<128x128xf32, #tpu.memory_space<vmem>>, vector<128x128xf32>
      tpu.vector_store %arg6[%c0_10, %c0_11], %12 {strides = array<i32>} : memref<128x128xf32, #tpu.memory_space<vmem>>, vector<128x128xf32>,
    } else {
    }
    %c0 = arith.constant 0 : index
    %c0_1 = arith.constant 0 : index
    %3 = vector.load %arg6[%c0, %c0_1] : memref<128x128xf32, #tpu.memory_space<vmem>>, vector<128x128xf32>
    %c0_2 = arith.constant 0 : index
    %c0_3 = arith.constant 0 : index
    %4 = vector.load %arg2[%c0_2, %c0_3] : memref<128x128xbf16, #tpu.memory_space<vmem>>, vector<128x128xbf16>
    %c0_4 = arith.constant 0 : index
    %c0_5 = arith.constant 0 : index
    %5 = vector.load %arg3[%c0_4, %c0_5] : memref<128x128xbf16, #tpu.memory_space<vmem>>, vector<128x128xbf16>
    %cst = arith.constant dense<0.000000e+00> : vector<128x128xf32>
    %6 = tpu.matmul %4, %5, %cst {dimension_numbers = #tpu.dot_dimension_numbers<[1], [0], [0], [1], [0, 0, 1, 1], [], []>} : vector<128x128xbf16>, vector<128x128xbf16>, vector<128x128xf32> -> vector<128x128xf32>
    %7 = arith.addf %3, %6 : vector<128x128xf32>
    %c0_6 = arith.constant 0 : index
    %c0_7 = arith.constant 0 : index
    %8 = vector.load %arg6[%c0_6, %c0_7] : memref<128x128xf32, #tpu.memory_space<vmem>>, vector<128x128xf32>
    tpu.vector_store %arg6[%c0_6, %c0_7], %7 {strides = array<i32>} : memref<128x128xf32, #tpu.memory_space<vmem>>, vector<128x128xf32>,
    %c1_i32 = arith.constant 1 : i32
    %9 = arith.cmpi eq, %arg1, %c1_i32 : i32
    %10 = arith.extui %9 : i1 to i32
    %c0_i32_8 = arith.constant 0 : i32
    %11 = arith.cmpi ne, %10, %c0_i32_8 : i32
    scf.if %11 {
      %c0_9 = arith.constant 0 : index
      %c0_10 = arith.constant 0 : index
      %12 = vector.load %arg6[%c0_9, %c0_10] : memref<128x128xf32, #tpu.memory_space<vmem>>, vector<128x128xf32>
      %c0_11 = arith.constant 0 : index
      %c0_12 = arith.constant 0 : index
      %13 = vector.load %arg4[%c0_11, %c0_12] : memref<1x128xf32, #tpu.memory_space<vmem>>, vector<1x128xf32>
      %14 = vector.broadcast %13 : vector<1x128xf32> to vector<128x128xf32>
      %15 = arith.addf %12, %14 : vector<128x128xf32>
      %cst_13 = arith.constant 0.000000e+00 : f32
      %16 = vector.broadcast %cst_13 : f32 to vector<128x128xf32>
      %17 = arith.maximumf %15, %16 : vector<128x128xf32>
      %c0_14 = arith.constant 0 : index
      %c0_15 = arith.constant 0 : index
      %18 = vector.load %arg5[%c0_14, %c0_15] : memref<128x128xf32, #tpu.memory_space<vmem>>, vector<128x128xf32>
      tpu.vector_store %arg5[%c0_14, %c0_15], %17 {strides = array<i32>} : memref<128x128xf32, #tpu.memory_space<vmem>>, vector<128x128xf32>,
    } else {
    }
    return
  }
  func.func @transform_0(%arg0: i32, %arg1: i32) -> (i32, i32) {
    %c0_i32 = arith.constant 0 : i32
    return %arg0, %arg1 : i32, i32
  }
  func.func @transform_1(%arg0: i32, %arg1: i32) -> (i32, i32) {
    %c0_i32 = arith.constant 0 : i32
    %c0_i32_0 = arith.constant 0 : i32
    return %arg1, %c0_i32 : i32, i32
  }
  func.func @transform_2(%arg0: i32, %arg1: i32) -> (i32, i32) {
    %c0_i32 = arith.constant 0 : i32
    %c0_i32_0 = arith.constant 0 : i32
    %c0_i32_1 = arith.constant 0 : i32
    return %c0_i32, %c0_i32_0 : i32, i32
  }
  func.func @transform_3(%arg0: i32, %arg1: i32) -> (i32, i32) {
    %c0_i32 = arith.constant 0 : i32
    %c0_i32_0 = arith.constant 0 : i32
    return %arg0, %c0_i32 : i32, i32
  }
}

module attributes {stable_mosaic.version = 11 : i64} {
  func.func @_proj_head_kernel(%arg0: i32, %arg1: memref<128x128xbf16, #tpu.memory_space<vmem>>, %arg2: memref<128x128xbf16, #tpu.memory_space<vmem>>, %arg3: memref<1x128xf32, #tpu.memory_space<vmem>>, %arg4: memref<128x128xbf16, #tpu.memory_space<vmem>>, %arg5: memref<1x128xf32, #tpu.memory_space<vmem>>, %arg6: memref<128x128xf32, #tpu.memory_space<vmem>>) attributes {dimension_semantics = [#tpu.dimension_semantics<parallel>], iteration_bounds = array<i64: 2>, scalar_prefetch = 0 : i64, scratch_operands = 0 : i64, tpu.core_type = #tpu.core_type<tc>, window_params = [{transform_indices = @transform_0, window_bounds = array<i64: 128, 128>}, {pipeline_mode = #tpu.pipeline_mode<synchronous>, transform_indices = @transform_1, window_bounds = array<i64: 128, 128>}, {pipeline_mode = #tpu.pipeline_mode<synchronous>, transform_indices = @transform_2, window_bounds = array<i64: 1, 128>}, {pipeline_mode = #tpu.pipeline_mode<synchronous>, transform_indices = @transform_3, window_bounds = array<i64: 128, 128>}, {pipeline_mode = #tpu.pipeline_mode<synchronous>, transform_indices = @transform_4, window_bounds = array<i64: 1, 128>}, {transform_indices = @transform_5, window_bounds = array<i64: 128, 128>}]} {
    %c0 = arith.constant 0 : index
    %c0_0 = arith.constant 0 : index
    %0 = vector.load %arg1[%c0, %c0_0] : memref<128x128xbf16, #tpu.memory_space<vmem>>, vector<128x128xbf16>
    %c0_1 = arith.constant 0 : index
    %c0_2 = arith.constant 0 : index
    %1 = vector.load %arg2[%c0_1, %c0_2] : memref<128x128xbf16, #tpu.memory_space<vmem>>, vector<128x128xbf16>
    %cst = arith.constant dense<0.000000e+00> : vector<128x128xf32>
    %2 = tpu.matmul %0, %1, %cst {dimension_numbers = #tpu.dot_dimension_numbers<[1], [0], [0], [1], [0, 0, 1, 1], [], []>} : vector<128x128xbf16>, vector<128x128xbf16>, vector<128x128xf32> -> vector<128x128xf32>
    %c0_3 = arith.constant 0 : index
    %c0_4 = arith.constant 0 : index
    %3 = vector.load %arg3[%c0_3, %c0_4] : memref<1x128xf32, #tpu.memory_space<vmem>>, vector<1x128xf32>
    %4 = vector.broadcast %3 : vector<1x128xf32> to vector<128x128xf32>
    %5 = arith.addf %2, %4 : vector<128x128xf32>
    %cst_5 = arith.constant 0.000000e+00 : f32
    %6 = vector.broadcast %cst_5 : f32 to vector<128x128xf32>
    %7 = arith.maximumf %5, %6 : vector<128x128xf32>
    %8 = arith.truncf %7 : vector<128x128xf32> to vector<128x128xbf16>
    %c0_6 = arith.constant 0 : index
    %c0_7 = arith.constant 0 : index
    %9 = vector.load %arg4[%c0_6, %c0_7] : memref<128x128xbf16, #tpu.memory_space<vmem>>, vector<128x128xbf16>
    %cst_8 = arith.constant dense<0.000000e+00> : vector<128x128xf32>
    %10 = tpu.matmul %8, %9, %cst_8 {dimension_numbers = #tpu.dot_dimension_numbers<[1], [0], [0], [1], [0, 0, 1, 1], [], []>} : vector<128x128xbf16>, vector<128x128xbf16>, vector<128x128xf32> -> vector<128x128xf32>
    %c0_9 = arith.constant 0 : index
    %c0_10 = arith.constant 0 : index
    %11 = vector.load %arg5[%c0_9, %c0_10] : memref<1x128xf32, #tpu.memory_space<vmem>>, vector<1x128xf32>
    %12 = vector.broadcast %11 : vector<1x128xf32> to vector<128x128xf32>
    %13 = arith.addf %10, %12 : vector<128x128xf32>
    %c0_11 = arith.constant 0 : index
    %c0_12 = arith.constant 0 : index
    %14 = vector.load %arg6[%c0_11, %c0_12] : memref<128x128xf32, #tpu.memory_space<vmem>>, vector<128x128xf32>
    tpu.vector_store %arg6[%c0_11, %c0_12], %13 {strides = array<i32>} : memref<128x128xf32, #tpu.memory_space<vmem>>, vector<128x128xf32>,
    return
  }
  func.func @transform_0(%arg0: i32) -> (i32, i32) {
    %c0_i32 = arith.constant 0 : i32
    %c0_i32_0 = arith.constant 0 : i32
    return %arg0, %c0_i32 : i32, i32
  }
  func.func @transform_1(%arg0: i32) -> (i32, i32) {
    %c0_i32 = arith.constant 0 : i32
    %c0_i32_0 = arith.constant 0 : i32
    %c0_i32_1 = arith.constant 0 : i32
    return %c0_i32, %c0_i32_0 : i32, i32
  }
  func.func @transform_2(%arg0: i32) -> (i32, i32) {
    %c0_i32 = arith.constant 0 : i32
    %c0_i32_0 = arith.constant 0 : i32
    %c0_i32_1 = arith.constant 0 : i32
    return %c0_i32, %c0_i32_0 : i32, i32
  }
  func.func @transform_3(%arg0: i32) -> (i32, i32) {
    %c0_i32 = arith.constant 0 : i32
    %c0_i32_0 = arith.constant 0 : i32
    %c0_i32_1 = arith.constant 0 : i32
    return %c0_i32, %c0_i32_0 : i32, i32
  }
  func.func @transform_4(%arg0: i32) -> (i32, i32) {
    %c0_i32 = arith.constant 0 : i32
    %c0_i32_0 = arith.constant 0 : i32
    %c0_i32_1 = arith.constant 0 : i32
    return %c0_i32, %c0_i32_0 : i32, i32
  }
  func.func @transform_5(%arg0: i32) -> (i32, i32) {
    %c0_i32 = arith.constant 0 : i32
    %c0_i32_0 = arith.constant 0 : i32
    return %arg0, %c0_i32 : i32, i32
  }
}

module attributes {stable_mosaic.version = 11 : i64} {
  func.func @_add_pool_kernel(%arg0: i32, %arg1: memref<8x128xbf16, #tpu.memory_space<vmem>>, %arg2: memref<128x384xbf16, #tpu.memory_space<vmem>>, %arg3: memref<8x384xf32, #tpu.memory_space<vmem>>, %arg4: memref<8x384xf32, #tpu.memory_space<vmem>>) attributes {dimension_semantics = [#tpu.dimension_semantics<arbitrary>], iteration_bounds = array<i64: 2>, scalar_prefetch = 0 : i64, scratch_operands = 1 : i64, tpu.core_type = #tpu.core_type<tc>, window_params = [{transform_indices = @transform_0, window_bounds = array<i64: 8, 128>}, {transform_indices = @transform_1, window_bounds = array<i64: 128, 384>}, {pipeline_mode = #tpu.pipeline_mode<synchronous>, transform_indices = @transform_2, window_bounds = array<i64: 8, 384>}]} {
    %c0_i32 = arith.constant 0 : i32
    %0 = arith.cmpi eq, %arg0, %c0_i32 : i32
    %1 = arith.extui %0 : i1 to i32
    %c0_i32_0 = arith.constant 0 : i32
    %2 = arith.cmpi ne, %1, %c0_i32_0 : i32
    scf.if %2 {
      %cst_9 = arith.constant 0.000000e+00 : f32
      %12 = vector.broadcast %cst_9 : f32 to vector<8x384xf32>
      %c0_10 = arith.constant 0 : index
      %c0_11 = arith.constant 0 : index
      %13 = vector.load %arg4[%c0_10, %c0_11] : memref<8x384xf32, #tpu.memory_space<vmem>>, vector<8x384xf32>
      tpu.vector_store %arg4[%c0_10, %c0_11], %12 {strides = array<i32>} : memref<8x384xf32, #tpu.memory_space<vmem>>, vector<8x384xf32>,
    } else {
    }
    %c0 = arith.constant 0 : index
    %c0_1 = arith.constant 0 : index
    %3 = vector.load %arg4[%c0, %c0_1] : memref<8x384xf32, #tpu.memory_space<vmem>>, vector<8x384xf32>
    %c0_2 = arith.constant 0 : index
    %c0_3 = arith.constant 0 : index
    %4 = vector.load %arg1[%c0_2, %c0_3] : memref<8x128xbf16, #tpu.memory_space<vmem>>, vector<8x128xbf16>
    %c0_4 = arith.constant 0 : index
    %c0_5 = arith.constant 0 : index
    %5 = vector.load %arg2[%c0_4, %c0_5] : memref<128x384xbf16, #tpu.memory_space<vmem>>, vector<128x384xbf16>
    %cst = arith.constant dense<0.000000e+00> : vector<8x384xf32>
    %6 = tpu.matmul %4, %5, %cst {dimension_numbers = #tpu.dot_dimension_numbers<[1], [0], [0], [1], [0, 0, 1, 1], [], []>} : vector<8x128xbf16>, vector<128x384xbf16>, vector<8x384xf32> -> vector<8x384xf32>
    %7 = arith.addf %3, %6 : vector<8x384xf32>
    %c0_6 = arith.constant 0 : index
    %c0_7 = arith.constant 0 : index
    %8 = vector.load %arg4[%c0_6, %c0_7] : memref<8x384xf32, #tpu.memory_space<vmem>>, vector<8x384xf32>
    tpu.vector_store %arg4[%c0_6, %c0_7], %7 {strides = array<i32>} : memref<8x384xf32, #tpu.memory_space<vmem>>, vector<8x384xf32>,
    %c1_i32 = arith.constant 1 : i32
    %9 = arith.cmpi eq, %arg0, %c1_i32 : i32
    %10 = arith.extui %9 : i1 to i32
    %c0_i32_8 = arith.constant 0 : i32
    %11 = arith.cmpi ne, %10, %c0_i32_8 : i32
    scf.if %11 {
      %c0_9 = arith.constant 0 : index
      %c0_10 = arith.constant 0 : index
      %12 = vector.load %arg4[%c0_9, %c0_10] : memref<8x384xf32, #tpu.memory_space<vmem>>, vector<8x384xf32>
      %c0_11 = arith.constant 0 : index
      %c0_12 = arith.constant 0 : index
      %13 = vector.load %arg3[%c0_11, %c0_12] : memref<8x384xf32, #tpu.memory_space<vmem>>, vector<8x384xf32>
      tpu.vector_store %arg3[%c0_11, %c0_12], %12 {strides = array<i32>} : memref<8x384xf32, #tpu.memory_space<vmem>>, vector<8x384xf32>,
    } else {
    }
    return
  }
  func.func @transform_0(%arg0: i32) -> (i32, i32) {
    %c0_i32 = arith.constant 0 : i32
    %c0_i32_0 = arith.constant 0 : i32
    return %c0_i32, %arg0 : i32, i32
  }
  func.func @transform_1(%arg0: i32) -> (i32, i32) {
    %c0_i32 = arith.constant 0 : i32
    %c0_i32_0 = arith.constant 0 : i32
    return %arg0, %c0_i32 : i32, i32
  }
  func.func @transform_2(%arg0: i32) -> (i32, i32) {
    %c0_i32 = arith.constant 0 : i32
    %c0_i32_0 = arith.constant 0 : i32
    %c0_i32_1 = arith.constant 0 : i32
    return %c0_i32, %c0_i32_0 : i32, i32
  }
}

</mosaic_0001>

<llo_original>
// kernel: gconv_forward.6
$region0: #{gconv_forward.6}
  #allocation0 [shape = 'u32[]', space=smem, size = 0x4, offset = 0x4, fixed_abs, tag = 'smem constant byte address 0x4 - core index']
  #allocation1 [shape = 'u32[72,128]{1,0:T(1,128)}', space=vmem, size = 0x9000, scoped, tag = 'internal scratch']
  %s0 = inlined_call_operand.vmem [shape: bf16[256,128], index: 0, kind: input, shape index: {}]
  %s1 = inlined_call_operand.vmem [shape: bf16[128,128], index: 1, kind: input, shape index: {}]
  %s2 = inlined_call_operand.vmem [shape: f32[256,128], index: 2, kind: output, shape index: {}]
  %s3 = sld [smem:[#allocation0]]
  $region41: #{gconv_forward.6} parent=0
    _
  %s5 = ssub.s32 1, %s3
  %s6 = scalar_select 0, %s5, %s3
  loop: start=0, step=1, limit=4
  $region2: #{gconv_forward.6} parent=0 // loop_pre_header
    _
  $region3: #{gconv_forward.6} parent=0 // loop_header
    %s8 = sphi 0, %s12
    %p9 = scmp.ge.s32.totalorder %s8, 4
    %s18 = sphi 0, %s20
    %s21 = sphi 0, %s18
    %s22 = sphi 0, %s21
    %s38 = sphi 0, %s22
    %s42 = sphi 0, %s42
    %s44 = sphi 0, %s42
    %s45 = sphi 0, %s44
    %s59 = sphi 0, %s45
    %s65 = sphi 0, %s67
    %s68 = sphi 0, %s65
    %s69 = sphi 0, %s68
    %s85 = sphi 0, %s69
  $region4: #{gconv_forward.6} parent=0 // loop_header_branch
    %11 = sbr.rel (%p9) target = $region8
  $region5: #{gconv_forward.6} parent=0 // loop_body
    %s13 = ssub.s32 %s8, 1
    %s14 = ssub.s32 %s8, 2
    %s15 = sadd.s32 %s8, 1
    %s16 = ssub.s32 %s8, %s15
    %p17 = scmp.eq.s32.totalorder %s16, 0
    %s19 = sadd.s32 %s18, 1
    %s20 = scalar_select %p17, %s18, %s19
    %p23 = pneg %p17
    %p24 = scmp.eq.s32.totalorder %s8, 1
    %p25 = por %p23, %p24
    %p26 = scmp.ne.s32.totalorder %s18, %s21
    %p27 = scmp.eq.s32.totalorder %s8, 0
    %p28 = por %p26, %p27
    %p29 = scmp.ne.s32.totalorder %s18, %s21
    %p30 = scmp.eq.s32.totalorder %s13, 1
    %p31 = por %p29, %p30
    %p32 = scmp.ne.s32.totalorder %s21, %s22
    %p33 = scmp.eq.s32.totalorder %s13, 0
    %p34 = por %p32, %p33
    %p35 = scmp.ne.s32.totalorder %s21, %s22
    %p36 = scmp.eq.s32.totalorder %s14, 1
    %p37 = por %p35, %p36
    %p39 = scmp.ne.s32.totalorder %s22, %s38
    %p40 = scmp.eq.s32.totalorder %s14, 0
    %p41 = por %p39, %p40
    %s43 = sadd.s32 %s42, 1
    %p46 = scmp.eq.s32.totalorder %s8, 1
    %p47 = scmp.ne.s32.totalorder %s42, %s44
    %p48 = scmp.eq.s32.totalorder %s8, 0
    %p49 = por %p47, %p48
    %p50 = scmp.ne.s32.totalorder %s42, %s44
    %p51 = scmp.eq.s32.totalorder %s13, 1
    %p52 = por %p50, %p51
    %p53 = scmp.ne.s32.totalorder %s44, %s45
    %p54 = scmp.eq.s32.totalorder %s13, 0
    %p55 = por %p53, %p54
    %p56 = scmp.ne.s32.totalorder %s44, %s45
    %p57 = scmp.eq.s32.totalorder %s14, 1
    %p58 = por %p56, %p57
    %p60 = scmp.ne.s32.totalorder %s45, %s59
    %p61 = scmp.eq.s32.totalorder %s14, 0
    %p62 = por %p60, %p61
    %s63 = ssub.s32 %s8, %s15
    %p64 = scmp.eq.s32.totalorder %s63, 0
    %s66 = sadd.s32 %s65, 1
    %s67 = scalar_select %p64, %s65, %s66
    %p70 = pneg %p64
    %p71 = scmp.eq.s32.totalorder %s8, 1
    %p72 = por %p70, %p71
    %p73 = scmp.ne.s32.totalorder %s65, %s68
    %p74 = scmp.eq.s32.totalorder %s8, 0
    %p75 = por %p73, %p74
    %p76 = scmp.ne.s32.totalorder %s65, %s68
    %p77 = scmp.eq.s32.totalorder %s13, 1
    %p78 = por %p76, %p77
    %p79 = scmp.ne.s32.totalorder %s68, %s69
    %p80 = scmp.eq.s32.totalorder %s13, 0
    %p81 = por %p79, %p80
    %p82 = scmp.ne.s32.totalorder %s68, %s69
    %p83 = scmp.eq.s32.totalorder %s14, 1
    %p84 = por %p82, %p83
    %p86 = scmp.ne.s32.totalorder %s69, %s85
    %p87 = scmp.eq.s32.totalorder %s14, 0
    %p88 = por %p86, %p87
    %p89 = scmp.le.s32.totalorder 1, %s8
    %p90 = scmp.lt.s32.totalorder %s8, 3
    %p91 = pnand %p89, %p90
    %p92 = pneg %p91
    // Predicated region
    $region9: #{gconv_forward.6} parent=5 // pred_check
      _
    $region10: #{gconv_forward.6} parent=5 // pred_check_branch
      %94 = sbr.rel (%p91) target = $region12
    $region11: #{gconv_forward.6} parent=5 // pred_region
      %s95 = ssub.s32 %s8, 1
      // Predicated region
      $region13: #{gconv_forward.6} parent=11 // pred_check
        %p96 = pneg %p55
      $region14: #{gconv_forward.6} parent=11 // pred_check_branch
        %98 = sbr.rel (%p96) target = $region16
      $region15: #{gconv_forward.6} parent=11 // pred_region
        _
      $region16: #{gconv_forward.6} parent=11 // pred_fallthru
        _
    $region12: #{gconv_forward.6} parent=5 // pred_fallthru
      _
    %p99 = scmp.lt.s32.totalorder %s8, 2
    // Predicated region
    $region17: #{gconv_forward.6} parent=5 // pred_check
      %p100 = pneg %p99
    $region18: #{gconv_forward.6} parent=5 // pred_check_branch
      %102 = sbr.rel (%p100) target = $region20
    $region19: #{gconv_forward.6} parent=5 // pred_region
      // Predicated region
      $region21: #{gconv_forward.6} parent=19 // pred_check
        %p103 = pneg %p28
      $region22: #{gconv_forward.6} parent=19 // pred_check_branch
        %105 = sbr.rel (%p103) target = $region24
      $region23: #{gconv_forward.6} parent=19 // pred_region
        %s106 = smul.u32 16, %s8
        %p107 = scmp.lt.s32.totalorder %s106, 31
        %s108 = scalar_select %p107, %s106, 31
        %s109 = smul.addr %s108, 4
        %s110 = scalar_lea.vmem %s0, %s109
        %s111 = smul.u32 16, %s8
      $region24: #{gconv_forward.6} parent=19 // pred_fallthru
        _
    $region20: #{gconv_forward.6} parent=5 // pred_fallthru
      _
    %p112 = scmp.le.s32.totalorder 1, %s8
    %p113 = scmp.lt.s32.totalorder %s8, 3
    %p114 = pnand %p112, %p113
    %p115 = pneg %p114
    // Predicated region
    $region25: #{gconv_forward.6} parent=5 // pred_check
      _
    $region26: #{gconv_forward.6} parent=5 // pred_check_branch
      %117 = sbr.rel (%p114) target = $region28
    $region27: #{gconv_forward.6} parent=5 // pred_region
      %s118 = ssub.s32 %s8, 1
      %s119 = smul.u32 16, %s13
      %p120 = scmp.lt.s32.totalorder %s119, 31
      %s121 = scalar_select %p120, %s119, 31
      %s122 = smul.addr %s121, 4
      %s123 = scalar_lea.vmem %s0, %s122
      %p124 = pneg %p34
      %p125 = pneg %p31
      %p126 = pneg %p55
      %p127 = pneg %p52
      %p128 = pneg %p81
      %p129 = pneg %p78
      %s130 = smul.u32 16, %s13
      %p131 = scmp.lt.s32.totalorder %s130, 31
      %s132 = scalar_select %p131, %s130, 31
      %s133 = smul.addr %s132, 8
      %s134 = scalar_lea.vmem %s2, %s133
      %s135 = smul.u32 16, %s13
      %p136 = scmp.lt.s32.totalorder %s135, 31
      %s137 = scalar_select %p136, %s135, 31
      %s138 = smul.addr %s137, 4
      %s139 = scalar_lea.vmem %s0, %s138
      %s140 = smul.u32 16, %s13
      %s141 = smul.u32 16, %s13
      %p142 = scmp.lt.s32.totalorder %s141, 31
      %s143 = scalar_select %p142, %s141, 31
      %s144 = smul.addr %s143, 8
      %s145 = scalar_lea.vmem %s2, %s144
      %s146 = smul.u32 16, %s13
      %v147 = vld [vmem:[%s139] sm:$0xf]
      %v148 = vld [vmem:[%s139 + $0x4] sm:$0xf]
      %v149 = vld [vmem:[%s139 + $0x8] sm:$0xf]
      %v150 = vld [vmem:[%s139 + $0xc] sm:$0xf]
      %v151 = vld [vmem:[%s139 + $0x10] sm:$0xf]
      %v152 = vld [vmem:[%s139 + $0x14] sm:$0xf]
      %v153 = vld [vmem:[%s139 + $0x18] sm:$0xf]
      %v154 = vld [vmem:[%s139 + $0x1c] sm:$0xf]
      %v155 = vld [vmem:[%s139 + $0x20] sm:$0xf]
      %v156 = vld [vmem:[%s139 + $0x24] sm:$0xf]
      %v157 = vld [vmem:[%s139 + $0x28] sm:$0xf]
      %v158 = vld [vmem:[%s139 + $0x2c] sm:$0xf]
      %v159 = vld [vmem:[%s139 + $0x30] sm:$0xf]
      %v160 = vld [vmem:[%s139 + $0x34] sm:$0xf]
      %v161 = vld [vmem:[%s139 + $0x38] sm:$0xf]
      %v162 = vld [vmem:[%s139 + $0x3c] sm:$0xf]
      %v163 = vld [vmem:[%s1] sm:$0xf]
      %v164 = vld [vmem:[%s1 + $0x4] sm:$0xf]
      %v165 = vld [vmem:[%s1 + $0x8] sm:$0xf]
      %v166 = vld [vmem:[%s1 + $0xc] sm:$0xf]
      %v167 = vld [vmem:[%s1 + $0x10] sm:$0xf]
      %v168 = vld [vmem:[%s1 + $0x14] sm:$0xf]
      %v169 = vld [vmem:[%s1 + $0x18] sm:$0xf]
      %v170 = vld [vmem:[%s1 + $0x1c] sm:$0xf]
      %v171 = vld [vmem:[%s1 + $0x20] sm:$0xf]
      %v172 = vld [vmem:[%s1 + $0x24] sm:$0xf]
      %v173 = vld [vmem:[%s1 + $0x28] sm:$0xf]
      %v174 = vld [vmem:[%s1 + $0x2c] sm:$0xf]
      %v175 = vld [vmem:[%s1 + $0x30] sm:$0xf]
      %v176 = vld [vmem:[%s1 + $0x34] sm:$0xf]
      %v177 = vld [vmem:[%s1 + $0x38] sm:$0xf]
      %v178 = vld [vmem:[%s1 + $0x3c] sm:$0xf]
      %v195 = vunpack.c.l.b16 %v147
      %v196 = vunpack.c.l.b16 %v148
      %v197 = vunpack.c.l.b16 %v149
      %v198 = vunpack.c.l.b16 %v150
      %v199 = vunpack.c.l.b16 %v151
      %v200 = vunpack.c.l.b16 %v152
      %v201 = vunpack.c.l.b16 %v153
      %v202 = vunpack.c.l.b16 %v154
      %v203 = vunpack.c.l.b16 %v155
      %v204 = vunpack.c.l.b16 %v156
      %v205 = vunpack.c.l.b16 %v157
      %v206 = vunpack.c.l.b16 %v158
      %v207 = vunpack.c.l.b16 %v159
      %v208 = vunpack.c.l.b16 %v160
      %v209 = vunpack.c.l.b16 %v161
      %v210 = vunpack.c.l.b16 %v162
      %v211 = vpack.c.b16 %v196, %v195
      %v212 = vpack.c.b16 %v198, %v197
      %v213 = vpack.c.b16 %v200, %v199
      %v214 = vpack.c.b16 %v202, %v201
      %v215 = vpack.c.b16 %v204, %v203
      %v216 = vpack.c.b16 %v206, %v205
      %v217 = vpack.c.b16 %v208, %v207
      %v218 = vpack.c.b16 %v210, %v209
      %v243 = vunpack.c.l.b16 %v163
      %v244 = vunpack.c.l.b16 %v164
      %v245 = vunpack.c.l.b16 %v165
      %v246 = vunpack.c.l.b16 %v166
      %v247 = vunpack.c.l.b16 %v167
      %v248 = vunpack.c.l.b16 %v168
      %v249 = vunpack.c.l.b16 %v169
      %v250 = vunpack.c.l.b16 %v170
      %v251 = vunpack.c.l.b16 %v171
      %v252 = vunpack.c.l.b16 %v172
      %v253 = vunpack.c.l.b16 %v173
      %v254 = vunpack.c.l.b16 %v174
      %v255 = vunpack.c.l.b16 %v175
      %v256 = vunpack.c.l.b16 %v176
      %v257 = vunpack.c.l.b16 %v177
      %v258 = vunpack.c.l.b16 %v178
      %v259 = vpack.c.b16 %v244, %v243
      %v260 = vpack.c.b16 %v246, %v245
      %v261 = vpack.c.b16 %v248, %v247
      %v262 = vpack.c.b16 %v250, %v249
      %v263 = vpack.c.b16 %v252, %v251
      %v264 = vpack.c.b16 %v254, %v253
      %v265 = vpack.c.b16 %v256, %v255
      %v266 = vpack.c.b16 %v258, %v257
      %275 = vmatpush.bf16.msra.mxu0 %v266
      %276 = vmatpush.bf16.msra.mxu0 %v265
      %277 = vmatpush.bf16.msra.mxu0 %v264
      %278 = vmatpush.bf16.msra.mxu0 %v263
      %279 = vmatpush.bf16.msra.mxu0 %v262
      %280 = vmatpush.bf16.msra.mxu0 %v261
      %281 = vmatpush.bf16.msra.mxu0 %v260
      %282 = vmatpush.bf16.msra.mxu0 %v259
      %283 = vmatmul.bf16.gmra.mxu0 %v211
      %v284 = vpop.f32.mrf.mxu0
      %v285 = vadd.f32 0.0, %v284
      %v286 = vpop.f32.mrf.mxu0
      %v287 = vadd.f32 0.0, %v286
      %288 = vmatmul.bf16.gmra.mxu0 %v212
      %v289 = vpop.f32.mrf.mxu0
      %v290 = vadd.f32 0.0, %v289
      %v291 = vpop.f32.mrf.mxu0
      %v292 = vadd.f32 0.0, %v291
      %293 = vmatmul.bf16.gmra.mxu0 %v213
      %v294 = vpop.f32.mrf.mxu0
      %v295 = vadd.f32 0.0, %v294
      %v296 = vpop.f32.mrf.mxu0
      %v297 = vadd.f32 0.0, %v296
      %298 = vmatmul.bf16.gmra.mxu0 %v214
      %v299 = vpop.f32.mrf.mxu0
      %v300 = vadd.f32 0.0, %v299
      %v301 = vpop.f32.mrf.mxu0
      %v302 = vadd.f32 0.0, %v301
      %303 = vmatmul.bf16.gmra.mxu0 %v215
      %v304 = vpop.f32.mrf.mxu0
      %v305 = vadd.f32 0.0, %v304
      %v306 = vpop.f32.mrf.mxu0
      %v307 = vadd.f32 0.0, %v306
      %308 = vmatmul.bf16.gmra.mxu0 %v216
      %v309 = vpop.f32.mrf.mxu0
      %v310 = vadd.f32 0.0, %v309
      %v311 = vpop.f32.mrf.mxu0
      %v312 = vadd.f32 0.0, %v311
      %313 = vmatmul.bf16.gmra.mxu0 %v217
      %v314 = vpop.f32.mrf.mxu0
      %v315 = vadd.f32 0.0, %v314
      %v316 = vpop.f32.mrf.mxu0
      %v317 = vadd.f32 0.0, %v316
      %318 = vmatmul.bf16.gmra.mxu0 %v218
      %v319 = vpop.f32.mrf.mxu0
      %v320 = vadd.f32 0.0, %v319
      %v321 = vpop.f32.mrf.mxu0
      %v322 = vadd.f32 0.0, %v321
      %323 = vdwg.mxu0
      %324 = vst [vmem:[%s145] sm:$0xff] %v285
      %325 = vst [vmem:[%s145 + $0x8] sm:$0xff] %v287
      %326 = vst [vmem:[%s145 + $0x10] sm:$0xff] %v290
      %327 = vst [vmem:[%s145 + $0x18] sm:$0xff] %v292
      %328 = vst [vmem:[%s145 + $0x20] sm:$0xff] %v295
      %329 = vst [vmem:[%s145 + $0x28] sm:$0xff] %v297
      %330 = vst [vmem:[%s145 + $0x30] sm:$0xff] %v300
      %331 = vst [vmem:[%s145 + $0x38] sm:$0xff] %v302
      %332 = vst [vmem:[%s145 + $0x40] sm:$0xff] %v305
      %333 = vst [vmem:[%s145 + $0x48] sm:$0xff] %v307
      %334 = vst [vmem:[%s145 + $0x50] sm:$0xff] %v310
      %335 = vst [vmem:[%s145 + $0x58] sm:$0xff] %v312
      %336 = vst [vmem:[%s145 + $0x60] sm:$0xff] %v315
      %337 = vst [vmem:[%s145 + $0x68] sm:$0xff] %v317
      %338 = vst [vmem:[%s145 + $0x70] sm:$0xff] %v320
      %339 = vst [vmem:[%s145 + $0x78] sm:$0xff] %v322
      %s340 = smul.u32 16, %s13
      %p341 = scmp.lt.s32.totalorder %s340, 31
      %s342 = scalar_select %p341, %s340, 31
      %s343 = smul.addr %s342, 8
      %s344 = scalar_lea.vmem %s2, %s343
      // Predicated region
      $region29: #{gconv_forward.6} parent=27 // pred_check
        %p345 = pneg %p78
      $region30: #{gconv_forward.6} parent=27 // pred_check_branch
        %347 = sbr.rel (%p345) target = $region32
      $region31: #{gconv_forward.6} parent=27 // pred_region
        %s348 = smul.u32 16, %s13
      $region32: #{gconv_forward.6} parent=27 // pred_fallthru
        _
    $region28: #{gconv_forward.6} parent=5 // pred_fallthru
      _
    %p349 = scmp.le.s32.totalorder 2, %s8
    // Predicated region
    $region33: #{gconv_forward.6} parent=5 // pred_check
      %p350 = pneg %p349
    $region34: #{gconv_forward.6} parent=5 // pred_check_branch
      %352 = sbr.rel (%p350) target = $region36
    $region35: #{gconv_forward.6} parent=5 // pred_region
      %s353 = ssub.s32 %s8, 2
      // Predicated region
      $region37: #{gconv_forward.6} parent=35 // pred_check
        %p354 = pneg %p84
      $region38: #{gconv_forward.6} parent=35 // pred_check_branch
        %356 = sbr.rel (%p354) target = $region40
      $region39: #{gconv_forward.6} parent=35 // pred_region
        %s357 = smul.u32 16, %s14
        %p358 = scmp.lt.s32.totalorder %s357, 31
        %s359 = scalar_select %p358, %s357, 31
        %s360 = smul.addr %s359, 8
        %s361 = scalar_lea.vmem %s2, %s360
      $region40: #{gconv_forward.6} parent=35 // pred_fallthru
        _
    $region36: #{gconv_forward.6} parent=5 // pred_fallthru
      _
  $region6: #{gconv_forward.6} parent=0 // loop_footer
    %s12 = sadd.s32 1, %s8
  $region7: #{gconv_forward.6} parent=0 // loop_footer_branch
    %7 = sbr.rel target = $region3
  $region8: #{gconv_forward.6} parent=0 // loop_exit
    _

// kernel: gconv_forward.7
$region0: #{gconv_forward.7}
  #allocation0 [shape = 'u32[]', space=smem, size = 0x4, offset = 0x4, fixed_abs, tag = 'smem constant byte address 0x4 - core index']
  #allocation1 [shape = 'u32[72,128]{1,0:T(1,128)}', space=vmem, size = 0x9000, scoped, tag = 'internal scratch']
  #allocation2 [shape = 'f32[128,128]{1,0:T(8,128)}', space=vmem, size = 0x10000, scoped, tag = 'scratch operand']
  %s0 = inlined_call_operand.vmem [shape: bf16[256,256], index: 0, kind: input, shape index: {}]
  %s1 = inlined_call_operand.vmem [shape: bf16[256,128], index: 1, kind: input, shape index: {}]
  %s2 = inlined_call_operand.vmem [shape: f32[1,128], index: 2, kind: input, shape index: {}]
  %s3 = inlined_call_operand.vmem [shape: f32[256,128], index: 3, kind: output, shape index: {}]
  %s4 = sld [smem:[#allocation0]]
  $region94: #{gconv_forward.7} parent=0
    _
  %s6 = ssub.s32 1, %s4
  %s7 = scalar_select 0, %s6, %s4
  $region1: #{gconv_forward.7} parent=0
    #allocation3 [shape = 'u8[65536]{0}', space=vmem, size = 0x10000, scoped, tag = 'input window, operand 0']
    loop: start=0, step=1, limit=6
    $region2: #{gconv_forward.7} parent=1 // loop_pre_header
      _
    $region3: #{gconv_forward.7} parent=1 // loop_header
      %s9 = sphi 0, %s13
      %p10 = scmp.ge.s32.totalorder %s9, 6
      %s16 = sphi 0, %s28
      %s17 = sphi 0, %s24
      %s18 = sphi 0, %s16
      %s19 = sphi 0, %s17
      %s20 = sphi 0, %s18
      %s21 = sphi 0, %s19
      %s33 = sphi 0, %s35
      %s36 = sphi 0, %s33
      %s37 = sphi 0, %s36
      %s53 = sphi 0, %s37
      %s59 = sphi 0, %s61
      %s62 = sphi 0, %s59
      %s63 = sphi 0, %s62
      %s79 = sphi 0, %s63
      %s83 = sphi 0, %s83
      %s85 = sphi 0, %s83
      %s86 = sphi 0, %s85
      %s100 = sphi 0, %s86
      %s106 = sphi 0, %s108
      %s109 = sphi 0, %s106
      %s110 = sphi 0, %s109
      %s126 = sphi 0, %s110
    $region4: #{gconv_forward.7} parent=1 // loop_header_branch
      %12 = sbr.rel (%p10) target = $region8
    $region5: #{gconv_forward.7} parent=1 // loop_body
      %s14 = ssub.s32 %s9, 1
      %s15 = ssub.s32 %s9, 2
      %s22 = sadd.s32 1, %s17
      %p23 = scmp.ge.s32.totalorder %s22, 2
      %s24 = scalar_select %p23, 0, %s22
      %s25 = sadd.s32 1, %s16
      %s26 = scalar_select %p23, %s25, %s16
      %p27 = scmp.ge.s32.totalorder %s26, 2
      %s28 = scalar_select %p27, 0, %s26
      %s29 = ssub.s32 %s16, %s28
      %s30 = ssub.s32 %s17, %s24
      %s31 = sor.u32 %s29, %s30
      %p32 = scmp.eq.s32.totalorder %s31, 0
      %s34 = sadd.s32 %s33, 1
      %s35 = scalar_select %p32, %s33, %s34
      %p38 = pneg %p32
      %p39 = scmp.eq.s32.totalorder %s9, 3
      %p40 = por %p38, %p39
      %p41 = scmp.ne.s32.totalorder %s33, %s36
      %p42 = scmp.eq.s32.totalorder %s9, 0
      %p43 = por %p41, %p42
      %p44 = scmp.ne.s32.totalorder %s33, %s36
      %p45 = scmp.eq.s32.totalorder %s14, 3
      %p46 = por %p44, %p45
      %p47 = scmp.ne.s32.totalorder %s36, %s37
      %p48 = scmp.eq.s32.totalorder %s14, 0
      %p49 = por %p47, %p48
      %p50 = scmp.ne.s32.totalorder %s36, %s37
      %p51 = scmp.eq.s32.totalorder %s15, 3
      %p52 = por %p50, %p51
      %p54 = scmp.ne.s32.totalorder %s37, %s53
      %p55 = scmp.eq.s32.totalorder %s15, 0
      %p56 = por %p54, %p55
      %s57 = ssub.s32 %s17, %s24
      %p58 = scmp.eq.s32.totalorder %s57, 0
      %s60 = sadd.s32 %s59, 1
      %s61 = scalar_select %p58, %s59, %s60
      %p64 = pneg %p58
      %p65 = scmp.eq.s32.totalorder %s9, 3
      %p66 = por %p64, %p65
      %p67 = scmp.ne.s32.totalorder %s59, %s62
      %p68 = scmp.eq.s32.totalorder %s9, 0
      %p69 = por %p67, %p68
      %p70 = scmp.ne.s32.totalorder %s59, %s62
      %p71 = scmp.eq.s32.totalorder %s14, 3
      %p72 = por %p70, %p71
      %p73 = scmp.ne.s32.totalorder %s62, %s63
      %p74 = scmp.eq.s32.totalorder %s14, 0
      %p75 = por %p73, %p74
      %p76 = scmp.ne.s32.totalorder %s62, %s63
      %p77 = scmp.eq.s32.totalorder %s15, 3
      %p78 = por %p76, %p77
      %p80 = scmp.ne.s32.totalorder %s63, %s79
      %p81 = scmp.eq.s32.totalorder %s15, 0
      %p82 = por %p80, %p81
      %s84 = sadd.s32 %s83, 1
      %p87 = scmp.eq.s32.totalorder %s9, 3
      %p88 = scmp.ne.s32.totalorder %s83, %s85
      %p89 = scmp.eq.s32.totalorder %s9, 0
      %p90 = por %p88, %p89
      %p91 = scmp.ne.s32.totalorder %s83, %s85
      %p92 = scmp.eq.s32.totalorder %s14, 3
      %p93 = por %p91, %p92
      %p94 = scmp.ne.s32.totalorder %s85, %s86
      %p95 = scmp.eq.s32.totalorder %s14, 0
      %p96 = por %p94, %p95
      %p97 = scmp.ne.s32.totalorder %s85, %s86
      %p98 = scmp.eq.s32.totalorder %s15, 3
      %p99 = por %p97, %p98
      %p101 = scmp.ne.s32.totalorder %s86, %s100
      %p102 = scmp.eq.s32.totalorder %s15, 0
      %p103 = por %p101, %p102
      %s104 = ssub.s32 %s16, %s28
      %p105 = scmp.eq.s32.totalorder %s104, 0
      %s107 = sadd.s32 %s106, 1
      %s108 = scalar_select %p105, %s106, %s107
      %p111 = pneg %p105
      %p112 = scmp.eq.s32.totalorder %s9, 3
      %p113 = por %p111, %p112
      %p114 = scmp.ne.s32.totalorder %s106, %s109
      %p115 = scmp.eq.s32.totalorder %s9, 0
      %p116 = por %p114, %p115
      %p117 = scmp.ne.s32.totalorder %s106, %s109
      %p118 = scmp.eq.s32.totalorder %s14, 3
      %p119 = por %p117, %p118
      %p120 = scmp.ne.s32.totalorder %s109, %s110
      %p121 = scmp.eq.s32.totalorder %s14, 0
      %p122 = por %p120, %p121
      %p123 = scmp.ne.s32.totalorder %s109, %s110
      %p124 = scmp.eq.s32.totalorder %s15, 3
      %p125 = por %p123, %p124
      %p127 = scmp.ne.s32.totalorder %s110, %s126
      %p128 = scmp.eq.s32.totalorder %s15, 0
      %p129 = por %p127, %p128
      %p130 = scmp.le.s32.totalorder 1, %s9
      %p131 = scmp.lt.s32.totalorder %s9, 5
      %p132 = pnand %p130, %p131
      %p133 = pneg %p132
      // Predicated region
      $region9: #{gconv_forward.7} parent=5 // pred_check
        _
      $region10: #{gconv_forward.7} parent=5 // pred_check_branch
        %135 = sbr.rel (%p132) target = $region12
      $region11: #{gconv_forward.7} parent=5 // pred_region
        %s136 = ssub.s32 %s9, 1
        // Predicated region
        $region13: #{gconv_forward.7} parent=11 // pred_check
          %p137 = pneg %p96
        $region14: #{gconv_forward.7} parent=11 // pred_check_branch
          %139 = sbr.rel (%p137) target = $region16
        $region15: #{gconv_forward.7} parent=11 // pred_region
          _
        $region16: #{gconv_forward.7} parent=11 // pred_fallthru
          _
      $region12: #{gconv_forward.7} parent=5 // pred_fallthru
        _
      %p140 = scmp.lt.s32.totalorder %s9, 4
      // Predicated region
      $region17: #{gconv_forward.7} parent=5 // pred_check
        %p141 = pneg %p140
      $region18: #{gconv_forward.7} parent=5 // pred_check_branch
        %143 = sbr.rel (%p141) target = $region20
      $region19: #{gconv_forward.7} parent=5 // pred_region
        // Predicated region
        $region21: #{gconv_forward.7} parent=19 // pred_check
          %p144 = pneg %p43
        $region22: #{gconv_forward.7} parent=19 // pred_check_branch
          %146 = sbr.rel (%p144) target = $region24
        $region23: #{gconv_forward.7} parent=19 // pred_region
          %s147 = sand.u32 %s33, 1
          %s148 = sand.u32 %s33, 1
          %s149 = smul.addr %s148, 64
          %s150 = scalar_lea.vmem [#allocation3], %s149
          %s151 = smul.u32 16, %s16
          %s152 = smul.addr %s151, 2
          %s153 = sadd.s32 %s17, %s152
          %s154 = smul.addr %s153, 4
          %s155 = scalar_lea.vmem %s0, %s154
          // Predicated region
          $region25: #{gconv_forward.7} parent=23 // pred_check
            _
          $region26: #{gconv_forward.7} parent=23 // pred_check_branch
            %157 = sbr.rel (0) target = $region28
          $region27: #{gconv_forward.7} parent=23 // pred_region
            // Predicated region
            $region29: #{gconv_forward.7} parent=27 // pred_check
              _
            $region30: #{gconv_forward.7} parent=27 // pred_check_branch
              %159 = sbr.rel target = $region32
            $region31: #{gconv_forward.7} parent=27 // pred_region
              // Predicated region
              $region44: #{gconv_forward.7} parent=31 // pred_check
                _
              $region45: #{gconv_forward.7} parent=31 // pred_check_branch
                %205 = sbr.rel (0) target = $region47
              $region46: #{gconv_forward.7} parent=31 // pred_region
                loop: start=0, step=1, limit=1
                $region48: #{gconv_forward.7} parent=46 // loop_pre_header
                  _
                $region49: #{gconv_forward.7} parent=46 // loop_header
                  %s207 = sphi 0, %s211
                  %p208 = scmp.ge.s32.totalorder %s207, 1
                  %s212 = sphi %s155, %s155
                  %s213 = sphi %s150, %s150
                $region50: #{gconv_forward.7} parent=46 // loop_header_branch
                  %210 = sbr.rel (%p208) target = $region54
                $region51: #{gconv_forward.7} parent=46 // loop_body
                  _
                $region52: #{gconv_forward.7} parent=46 // loop_footer
                  %s211 = sadd.s32 1, %s207
                $region53: #{gconv_forward.7} parent=46 // loop_footer_branch
                  %206 = sbr.rel target = $region49
                $region54: #{gconv_forward.7} parent=46 // loop_exit
                  _
                %s215 = ssub.s32 16, 1
                loop: start=0, step=1, limit=1
                $region55: #{gconv_forward.7} parent=46 // loop_pre_header
                  _
                $region56: #{gconv_forward.7} parent=46 // loop_header
                  %s217 = sphi 0, %s221
                  %p218 = scmp.ge.s32.totalorder %s217, 1
                  %s222 = sphi %s155, %s155
                  %s223 = sphi %s150, %s150
                $region57: #{gconv_forward.7} parent=46 // loop_header_branch
                  %220 = sbr.rel (%p218) target = $region61
                $region58: #{gconv_forward.7} parent=46 // loop_body
                  %v224 = vld [vmem:[%s222] sm:%s215]
                  %225 = vst [vmem:[%s223] sm:%s215] %v224
                  %v226 = vld [vmem:[%s222 + $0x8] sm:%s215]
                  %227 = vst [vmem:[%s223 + $0x4] sm:%s215] %v226
                  %v228 = vld [vmem:[%s222 + $0x10] sm:%s215]
                  %229 = vst [vmem:[%s223 + $0x8] sm:%s215] %v228
                  %v230 = vld [vmem:[%s222 + $0x18] sm:%s215]
                  %231 = vst [vmem:[%s223 + $0xc] sm:%s215] %v230
                  %v232 = vld [vmem:[%s222 + $0x20] sm:%s215]
                  %233 = vst [vmem:[%s223 + $0x10] sm:%s215] %v232
                  %v234 = vld [vmem:[%s222 + $0x28] sm:%s215]
                  %235 = vst [vmem:[%s223 + $0x14] sm:%s215] %v234
                  %v236 = vld [vmem:[%s222 + $0x30] sm:%s215]
                  %237 = vst [vmem:[%s223 + $0x18] sm:%s215] %v236
                  %v238 = vld [vmem:[%s222 + $0x38] sm:%s215]
                  %239 = vst [vmem:[%s223 + $0x1c] sm:%s215] %v238
                  %v240 = vld [vmem:[%s222 + $0x40] sm:%s215]
                  %241 = vst [vmem:[%s223 + $0x20] sm:%s215] %v240
                  %v242 = vld [vmem:[%s222 + $0x48] sm:%s215]
                  %243 = vst [vmem:[%s223 + $0x24] sm:%s215] %v242
                  %v244 = vld [vmem:[%s222 + $0x50] sm:%s215]
                  %245 = vst [vmem:[%s223 + $0x28] sm:%s215] %v244
                  %v246 = vld [vmem:[%s222 + $0x58] sm:%s215]
                  %247 = vst [vmem:[%s223 + $0x2c] sm:%s215] %v246
                  %v248 = vld [vmem:[%s222 + $0x60] sm:%s215]
                  %249 = vst [vmem:[%s223 + $0x30] sm:%s215] %v248
                  %v250 = vld [vmem:[%s222 + $0x68] sm:%s215]
                  %251 = vst [vmem:[%s223 + $0x34] sm:%s215] %v250
                  %v252 = vld [vmem:[%s222 + $0x70] sm:%s215]
                  %253 = vst [vmem:[%s223 + $0x38] sm:%s215] %v252
                  %v254 = vld [vmem:[%s222 + $0x78] sm:%s215]
                  %255 = vst [vmem:[%s223 + $0x3c] sm:%s215] %v254
                $region59: #{gconv_forward.7} parent=46 // loop_footer
                  %s221 = sadd.s32 1, %s217
                $region60: #{gconv_forward.7} parent=46 // loop_footer_branch
                  %216 = sbr.rel target = $region56
                $region61: #{gconv_forward.7} parent=46 // loop_exit
                  _
              $region47: #{gconv_forward.7} parent=31 // pred_fallthru
                _
            $region32: #{gconv_forward.7} parent=27 // pred_fallthru
              _
            // Predicated region
            $region33: #{gconv_forward.7} parent=27 // pred_check
              _
            $region34: #{gconv_forward.7} parent=27 // pred_check_branch
              %161 = sbr.rel (0) target = $region36
            $region35: #{gconv_forward.7} parent=27 // pred_region
              %s163 = ssub.s32 16, 1
              loop: start=0, step=1, limit=1
              $region37: #{gconv_forward.7} parent=35 // loop_pre_header
                _
              $region38: #{gconv_forward.7} parent=35 // loop_header
                %s165 = sphi 0, %s169
                %p166 = scmp.ge.s32.totalorder %s165, 1
                %s170 = sphi %s155, %s155
                %s171 = sphi %s150, %s150
              $region39: #{gconv_forward.7} parent=35 // loop_header_branch
                %168 = sbr.rel (%p166) target = $region43
              $region40: #{gconv_forward.7} parent=35 // loop_body
                %v172 = vld [vmem:[%s170] sm:%s163]
                %173 = vst [vmem:[%s171] sm:%s163] %v172
                %v174 = vld [vmem:[%s170 + $0x8] sm:%s163]
                %175 = vst [vmem:[%s171 + $0x4] sm:%s163] %v174
                %v176 = vld [vmem:[%s170 + $0x10] sm:%s163]
                %177 = vst [vmem:[%s171 + $0x8] sm:%s163] %v176
                %v178 = vld [vmem:[%s170 + $0x18] sm:%s163]
                %179 = vst [vmem:[%s171 + $0xc] sm:%s163] %v178
                %v180 = vld [vmem:[%s170 + $0x20] sm:%s163]
                %181 = vst [vmem:[%s171 + $0x10] sm:%s163] %v180
                %v182 = vld [vmem:[%s170 + $0x28] sm:%s163]
                %183 = vst [vmem:[%s171 + $0x14] sm:%s163] %v182
                %v184 = vld [vmem:[%s170 + $0x30] sm:%s163]
                %185 = vst [vmem:[%s171 + $0x18] sm:%s163] %v184
                %v186 = vld [vmem:[%s170 + $0x38] sm:%s163]
                %187 = vst [vmem:[%s171 + $0x1c] sm:%s163] %v186
                %v188 = vld [vmem:[%s170 + $0x40] sm:%s163]
                %189 = vst [vmem:[%s171 + $0x20] sm:%s163] %v188
                %v190 = vld [vmem:[%s170 + $0x48] sm:%s163]
                %191 = vst [vmem:[%s171 + $0x24] sm:%s163] %v190
                %v192 = vld [vmem:[%s170 + $0x50] sm:%s163]
                %193 = vst [vmem:[%s171 + $0x28] sm:%s163] %v192
                %v194 = vld [vmem:[%s170 + $0x58] sm:%s163]
                %195 = vst [vmem:[%s171 + $0x2c] sm:%s163] %v194
                %v196 = vld [vmem:[%s170 + $0x60] sm:%s163]
                %197 = vst [vmem:[%s171 + $0x30] sm:%s163] %v196
                %v198 = vld [vmem:[%s170 + $0x68] sm:%s163]
                %199 = vst [vmem:[%s171 + $0x34] sm:%s163] %v198
                %v200 = vld [vmem:[%s170 + $0x70] sm:%s163]
                %201 = vst [vmem:[%s171 + $0x38] sm:%s163] %v200
                %v202 = vld [vmem:[%s170 + $0x78] sm:%s163]
                %203 = vst [vmem:[%s171 + $0x3c] sm:%s163] %v202
              $region41: #{gconv_forward.7} parent=35 // loop_footer
                %s169 = sadd.s32 1, %s165
              $region42: #{gconv_forward.7} parent=35 // loop_footer_branch
                %164 = sbr.rel target = $region38
              $region43: #{gconv_forward.7} parent=35 // loop_exit
                _
            $region36: #{gconv_forward.7} parent=27 // pred_fallthru
              _
          $region28: #{gconv_forward.7} parent=23 // pred_fallthru
            _
          %256 = vnop
        $region24: #{gconv_forward.7} parent=19 // pred_fallthru
          _
        // Predicated region
        $region62: #{gconv_forward.7} parent=19 // pred_check
          %p257 = pneg %p69
        $region63: #{gconv_forward.7} parent=19 // pred_check_branch
          %259 = sbr.rel (%p257) target = $region65
        $region64: #{gconv_forward.7} parent=19 // pred_region
          %s260 = smul.u32 16, %s17
          %p261 = scmp.lt.s32.totalorder %s260, 31
          %s262 = scalar_select %p261, %s260, 31
          %s263 = smul.addr %s262, 4
          %s264 = scalar_lea.vmem %s1, %s263
          %s265 = smul.u32 16, %s17
        $region65: #{gconv_forward.7} parent=19 // pred_fallthru
          _
      $region20: #{gconv_forward.7} parent=5 // pred_fallthru
        _
      %p266 = scmp.le.s32.totalorder 1, %s9
      %p267 = scmp.lt.s32.totalorder %s9, 5
      %p268 = pnand %p266, %p267
      %p269 = pneg %p268
      // Predicated region
      $region66: #{gconv_forward.7} parent=5 // pred_check
        _
      $region67: #{gconv_forward.7} parent=5 // pred_check_branch
        %271 = sbr.rel (%p268) target = $region69
      $region68: #{gconv_forward.7} parent=5 // pred_region
        %s272 = ssub.s32 %s9, 1
        %s273 = sand.u32 %s36, 1
        %s274 = sand.u32 %s36, 1
        %s275 = smul.addr %s274, 64
        %s276 = scalar_lea.vmem [#allocation3], %s275
        // Predicated region
        $region70: #{gconv_forward.7} parent=68 // pred_check
          %p277 = pneg %p49
        $region71: #{gconv_forward.7} parent=68 // pred_check_branch
          %279 = sbr.rel (%p277) target = $region73
        $region72: #{gconv_forward.7} parent=68 // pred_region
          _
        $region73: #{gconv_forward.7} parent=68 // pred_fallthru
          _
        %s280 = sand.u32 %s36, 1
        %s281 = sand.u32 %s36, 1
        %s282 = smul.addr %s281, 64
        %s283 = scalar_lea.vmem [#allocation3], %s282
        %p284 = pneg %p49
        %p285 = pneg %p46
        %s286 = smul.u32 16, %s19
        %p287 = scmp.lt.s32.totalorder %s286, 31
        %s288 = scalar_select %p287, %s286, 31
        %s289 = smul.addr %s288, 4
        %s290 = scalar_lea.vmem %s1, %s289
        %p291 = pneg %p75
        %p292 = pneg %p72
        %p293 = pneg %p96
        %p294 = pneg %p93
        %p295 = pneg %p122
        %p296 = pneg %p119
        %s297 = smul.u32 16, %s18
        %p298 = scmp.lt.s32.totalorder %s297, 31
        %s299 = scalar_select %p298, %s297, 31
        %s300 = smul.addr %s299, 8
        %s301 = scalar_lea.vmem %s3, %s300
        %s302 = smul.u32 16, %s18
        %s303 = smul.u32 16, %s19
        %p304 = scmp.lt.s32.totalorder %s303, 31
        %s305 = scalar_select %p304, %s303, 31
        %s306 = smul.addr %s305, 4
        %s307 = scalar_lea.vmem %s1, %s306
        %s308 = smul.u32 16, %s19
        %s309 = smul.u32 16, %s18
        %p310 = scmp.lt.s32.totalorder %s309, 31
        %s311 = scalar_select %p310, %s309, 31
        %s312 = smul.addr %s311, 8
        %s313 = scalar_lea.vmem %s3, %s312
        %s314 = smul.u32 16, %s18
        %p315 = scmp.eq.s32.totalorder %s19, 0
        // Predicated region
        $region74: #{gconv_forward.7} parent=68 // pred_check
          %p316 = pneg %p315
        $region75: #{gconv_forward.7} parent=68 // pred_check_branch
          %318 = sbr.rel (%p316) target = $region77
        $region76: #{gconv_forward.7} parent=68 // pred_region
          %319 = vst [vmem:[#allocation2] sm:$0xff] 0.0
          %320 = vst [vmem:[#allocation2 + $0x8] sm:$0xff] 0.0
          %321 = vst [vmem:[#allocation2 + $0x10] sm:$0xff] 0.0
          %322 = vst [vmem:[#allocation2 + $0x18] sm:$0xff] 0.0
          %323 = vst [vmem:[#allocation2 + $0x20] sm:$0xff] 0.0
          %324 = vst [vmem:[#allocation2 + $0x28] sm:$0xff] 0.0
          %325 = vst [vmem:[#allocation2 + $0x30] sm:$0xff] 0.0
          %326 = vst [vmem:[#allocation2 + $0x38] sm:$0xff] 0.0
          %327 = vst [vmem:[#allocation2 + $0x40] sm:$0xff] 0.0
          %328 = vst [vmem:[#allocation2 + $0x48] sm:$0xff] 0.0
          %329 = vst [vmem:[#allocation2 + $0x50] sm:$0xff] 0.0
          %330 = vst [vmem:[#allocation2 + $0x58] sm:$0xff] 0.0
          %331 = vst [vmem:[#allocation2 + $0x60] sm:$0xff] 0.0
          %332 = vst [vmem:[#allocation2 + $0x68] sm:$0xff] 0.0
          %333 = vst [vmem:[#allocation2 + $0x70] sm:$0xff] 0.0
          %334 = vst [vmem:[#allocation2 + $0x78] sm:$0xff] 0.0
        $region77: #{gconv_forward.7} parent=68 // pred_fallthru
          _
        %v335 = vld [vmem:[#allocation2] sm:$0xff]
        %v336 = vld [vmem:[#allocation2 + $0x8] sm:$0xff]
        %v337 = vld [vmem:[#allocation2 + $0x10] sm:$0xff]
        %v338 = vld [vmem:[#allocation2 + $0x18] sm:$0xff]
        %v339 = vld [vmem:[#allocation2 + $0x20] sm:$0xff]
        %v340 = vld [vmem:[#allocation2 + $0x28] sm:$0xff]
        %v341 = vld [vmem:[#allocation2 + $0x30] sm:$0xff]
        %v342 = vld [vmem:[#allocation2 + $0x38] sm:$0xff]
        %v343 = vld [vmem:[#allocation2 + $0x40] sm:$0xff]
        %v344 = vld [vmem:[#allocation2 + $0x48] sm:$0xff]
        %v345 = vld [vmem:[#allocation2 + $0x50] sm:$0xff]
        %v346 = vld [vmem:[#allocation2 + $0x58] sm:$0xff]
        %v347 = vld [vmem:[#allocation2 + $0x60] sm:$0xff]
        %v348 = vld [vmem:[#allocation2 + $0x68] sm:$0xff]
        %v349 = vld [vmem:[#allocation2 + $0x70] sm:$0xff]
        %v350 = vld [vmem:[#allocation2 + $0x78] sm:$0xff]
        %v351 = vld [vmem:[%s276] sm:$0xf]
        %v352 = vld [vmem:[%s276 + $0x4] sm:$0xf]
        %v353 = vld [vmem:[%s276 + $0x8] sm:$0xf]
        %v354 = vld [vmem:[%s276 + $0xc] sm:$0xf]
        %v355 = vld [vmem:[%s276 + $0x10] sm:$0xf]
        %v356 = vld [vmem:[%s276 + $0x14] sm:$0xf]
        %v357 = vld [vmem:[%s276 + $0x18] sm:$0xf]
        %v358 = vld [vmem:[%s276 + $0x1c] sm:$0xf]
        %v359 = vld [vmem:[%s276 + $0x20] sm:$0xf]
        %v360 = vld [vmem:[%s276 + $0x24] sm:$0xf]
        %v361 = vld [vmem:[%s276 + $0x28] sm:$0xf]
        %v362 = vld [vmem:[%s276 + $0x2c] sm:$0xf]
        %v363 = vld [vmem:[%s276 + $0x30] sm:$0xf]
        %v364 = vld [vmem:[%s276 + $0x34] sm:$0xf]
        %v365 = vld [vmem:[%s276 + $0x38] sm:$0xf]
        %v366 = vld [vmem:[%s276 + $0x3c] sm:$0xf]
        %v367 = vld [vmem:[%s307] sm:$0xf]
        %v368 = vld [vmem:[%s307 + $0x4] sm:$0xf]
        %v369 = vld [vmem:[%s307 + $0x8] sm:$0xf]
        %v370 = vld [vmem:[%s307 + $0xc] sm:$0xf]
        %v371 = vld [vmem:[%s307 + $0x10] sm:$0xf]
        %v372 = vld [vmem:[%s307 + $0x14] sm:$0xf]
        %v373 = vld [vmem:[%s307 + $0x18] sm:$0xf]
        %v374 = vld [vmem:[%s307 + $0x1c] sm:$0xf]
        %v375 = vld [vmem:[%s307 + $0x20] sm:$0xf]
        %v376 = vld [vmem:[%s307 + $0x24] sm:$0xf]
        %v377 = vld [vmem:[%s307 + $0x28] sm:$0xf]
        %v378 = vld [vmem:[%s307 + $0x2c] sm:$0xf]
        %v379 = vld [vmem:[%s307 + $0x30] sm:$0xf]
        %v380 = vld [vmem:[%s307 + $0x34] sm:$0xf]
        %v381 = vld [vmem:[%s307 + $0x38] sm:$0xf]
        %v382 = vld [vmem:[%s307 + $0x3c] sm:$0xf]
        %v399 = vunpack.c.l.b16 %v351
        %v400 = vunpack.c.l.b16 %v352
        %v401 = vunpack.c.l.b16 %v353
        %v402 = vunpack.c.l.b16 %v354
        %v403 = vunpack.c.l.b16 %v355
        %v404 = vunpack.c.l.b16 %v356
        %v405 = vunpack.c.l.b16 %v357
        %v406 = vunpack.c.l.b16 %v358
        %v407 = vunpack.c.l.b16 %v359
        %v408 = vunpack.c.l.b16 %v360
        %v409 = vunpack.c.l.b16 %v361
        %v410 = vunpack.c.l.b16 %v362
        %v411 = vunpack.c.l.b16 %v363
        %v412 = vunpack.c.l.b16 %v364
        %v413 = vunpack.c.l.b16 %v365
        %v414 = vunpack.c.l.b16 %v366
        %v415 = vpack.c.b16 %v400, %v399
        %v416 = vpack.c.b16 %v402, %v401
        %v417 = vpack.c.b16 %v404, %v403
        %v418 = vpack.c.b16 %v406, %v405
        %v419 = vpack.c.b16 %v408, %v407
        %v420 = vpack.c.b16 %v410, %v409
        %v421 = vpack.c.b16 %v412, %v411
        %v422 = vpack.c.b16 %v414, %v413
        %v447 = vunpack.c.l.b16 %v367
        %v448 = vunpack.c.l.b16 %v368
        %v449 = vunpack.c.l.b16 %v369
        %v450 = vunpack.c.l.b16 %v370
        %v451 = vunpack.c.l.b16 %v371
        %v452 = vunpack.c.l.b16 %v372
        %v453 = vunpack.c.l.b16 %v373
        %v454 = vunpack.c.l.b16 %v374
        %v455 = vunpack.c.l.b16 %v375
        %v456 = vunpack.c.l.b16 %v376
        %v457 = vunpack.c.l.b16 %v377
        %v458 = vunpack.c.l.b16 %v378
        %v459 = vunpack.c.l.b16 %v379
        %v460 = vunpack.c.l.b16 %v380
        %v461 = vunpack.c.l.b16 %v381
        %v462 = vunpack.c.l.b16 %v382
        %v463 = vpack.c.b16 %v448, %v447
        %v464 = vpack.c.b16 %v450, %v449
        %v465 = vpack.c.b16 %v452, %v451
        %v466 = vpack.c.b16 %v454, %v453
        %v467 = vpack.c.b16 %v456, %v455
        %v468 = vpack.c.b16 %v458, %v457
        %v469 = vpack.c.b16 %v460, %v459
        %v470 = vpack.c.b16 %v462, %v461
        %479 = vmatpush.bf16.msra.mxu0 %v470
        %480 = vmatpush.bf16.msra.mxu0 %v469
        %481 = vmatpush.bf16.msra.mxu0 %v468
        %482 = vmatpush.bf16.msra.mxu0 %v467
        %483 = vmatpush.bf16.msra.mxu0 %v466
        %484 = vmatpush.bf16.msra.mxu0 %v465
        %485 = vmatpush.bf16.msra.mxu0 %v464
        %486 = vmatpush.bf16.msra.mxu0 %v463
        %487 = vmatmul.bf16.gmra.mxu0 %v415
        %v488 = vpop.f32.mrf.mxu0
        %v489 = vadd.f32 0.0, %v488
        %v490 = vpop.f32.mrf.mxu0
        %v491 = vadd.f32 0.0, %v490
        %492 = vmatmul.bf16.gmra.mxu0 %v416
        %v493 = vpop.f32.mrf.mxu0
        %v494 = vadd.f32 0.0, %v493
        %v495 = vpop.f32.mrf.mxu0
        %v496 = vadd.f32 0.0, %v495
        %497 = vmatmul.bf16.gmra.mxu0 %v417
        %v498 = vpop.f32.mrf.mxu0
        %v499 = vadd.f32 0.0, %v498
        %v500 = vpop.f32.mrf.mxu0
        %v501 = vadd.f32 0.0, %v500
        %502 = vmatmul.bf16.gmra.mxu0 %v418
        %v503 = vpop.f32.mrf.mxu0
        %v504 = vadd.f32 0.0, %v503
        %v505 = vpop.f32.mrf.mxu0
        %v506 = vadd.f32 0.0, %v505
        %507 = vmatmul.bf16.gmra.mxu0 %v419
        %v508 = vpop.f32.mrf.mxu0
        %v509 = vadd.f32 0.0, %v508
        %v510 = vpop.f32.mrf.mxu0
        %v511 = vadd.f32 0.0, %v510
        %512 = vmatmul.bf16.gmra.mxu0 %v420
        %v513 = vpop.f32.mrf.mxu0
        %v514 = vadd.f32 0.0, %v513
        %v515 = vpop.f32.mrf.mxu0
        %v516 = vadd.f32 0.0, %v515
        %517 = vmatmul.bf16.gmra.mxu0 %v421
        %v518 = vpop.f32.mrf.mxu0
        %v519 = vadd.f32 0.0, %v518
        %v520 = vpop.f32.mrf.mxu0
        %v521 = vadd.f32 0.0, %v520
        %522 = vmatmul.bf16.gmra.mxu0 %v422
        %v523 = vpop.f32.mrf.mxu0
        %v524 = vadd.f32 0.0, %v523
        %v525 = vpop.f32.mrf.mxu0
        %v526 = vadd.f32 0.0, %v525
        %527 = vdwg.mxu0
        %v528 = vadd.f32 %v335, %v489
        %v529 = vadd.f32 %v336, %v491
        %v530 = vadd.f32 %v337, %v494
        %v531 = vadd.f32 %v338, %v496
        %v532 = vadd.f32 %v339, %v499
        %v533 = vadd.f32 %v340, %v501
        %v534 = vadd.f32 %v341, %v504
        %v535 = vadd.f32 %v342, %v506
        %v536 = vadd.f32 %v343, %v509
        %v537 = vadd.f32 %v344, %v511
        %v538 = vadd.f32 %v345, %v514
        %v539 = vadd.f32 %v346, %v516
        %v540 = vadd.f32 %v347, %v519
        %v541 = vadd.f32 %v348, %v521
        %v542 = vadd.f32 %v349, %v524
        %v543 = vadd.f32 %v350, %v526
        %544 = vst [vmem:[#allocation2] sm:$0xff] %v528
        %545 = vst [vmem:[#allocation2 + $0x8] sm:$0xff] %v529
        %546 = vst [vmem:[#allocation2 + $0x10] sm:$0xff] %v530
        %547 = vst [vmem:[#allocation2 + $0x18] sm:$0xff] %v531
        %548 = vst [vmem:[#allocation2 + $0x20] sm:$0xff] %v532
        %549 = vst [vmem:[#allocation2 + $0x28] sm:$0xff] %v533
        %550 = vst [vmem:[#allocation2 + $0x30] sm:$0xff] %v534
        %551 = vst [vmem:[#allocation2 + $0x38] sm:$0xff] %v535
        %552 = vst [vmem:[#allocation2 + $0x40] sm:$0xff] %v536
        %553 = vst [vmem:[#allocation2 + $0x48] sm:$0xff] %v537
        %554 = vst [vmem:[#allocation2 + $0x50] sm:$0xff] %v538
        %555 = vst [vmem:[#allocation2 + $0x58] sm:$0xff] %v539
        %556 = vst [vmem:[#allocation2 + $0x60] sm:$0xff] %v540
        %557 = vst [vmem:[#allocation2 + $0x68] sm:$0xff] %v541
        %558 = vst [vmem:[#allocation2 + $0x70] sm:$0xff] %v542
        %559 = vst [vmem:[#allocation2 + $0x78] sm:$0xff] %v543
        %p560 = scmp.eq.s32.totalorder %s19, 1
        // Predicated region
        $region78: #{gconv_forward.7} parent=68 // pred_check
          %p561 = pneg %p560
        $region79: #{gconv_forward.7} parent=68 // pred_check_branch
          %563 = sbr.rel (%p561) target = $region81
        $region80: #{gconv_forward.7} parent=68 // pred_region
          %v564 = vld [vmem:[#allocation2] sm:$0xff]
          %v565 = vld [vmem:[#allocation2 + $0x8] sm:$0xff]
          %v566 = vld [vmem:[#allocation2 + $0x10] sm:$0xff]
          %v567 = vld [vmem:[#allocation2 + $0x18] sm:$0xff]
          %v568 = vld [vmem:[#allocation2 + $0x20] sm:$0xff]
          %v569 = vld [vmem:[#allocation2 + $0x28] sm:$0xff]
          %v570 = vld [vmem:[#allocation2 + $0x30] sm:$0xff]
          %v571 = vld [vmem:[#allocation2 + $0x38] sm:$0xff]
          %v572 = vld [vmem:[#allocation2 + $0x40] sm:$0xff]
          %v573 = vld [vmem:[#allocation2 + $0x48] sm:$0xff]
          %v574 = vld [vmem:[#allocation2 + $0x50] sm:$0xff]
          %v575 = vld [vmem:[#allocation2 + $0x58] sm:$0xff]
          %v576 = vld [vmem:[#allocation2 + $0x60] sm:$0xff]
          %v577 = vld [vmem:[#allocation2 + $0x68] sm:$0xff]
          %v578 = vld [vmem:[#allocation2 + $0x70] sm:$0xff]
          %v579 = vld [vmem:[#allocation2 + $0x78] sm:$0xff]
          %v580 = vld [vmem:[%s2] sm:$0x1]
          %v582 = vperm.slane %v580, 0
          %v584 = vadd.f32 %v564, %v582
          %v585 = vadd.f32 %v565, %v582
          %v586 = vadd.f32 %v566, %v582
          %v587 = vadd.f32 %v567, %v582
          %v588 = vadd.f32 %v568, %v582
          %v589 = vadd.f32 %v569, %v582
          %v590 = vadd.f32 %v570, %v582
          %v591 = vadd.f32 %v571, %v582
          %v592 = vadd.f32 %v572, %v582
          %v593 = vadd.f32 %v573, %v582
          %v594 = vadd.f32 %v574, %v582
          %v595 = vadd.f32 %v575, %v582
          %v596 = vadd.f32 %v576, %v582
          %v597 = vadd.f32 %v577, %v582
          %v598 = vadd.f32 %v578, %v582
          %v599 = vadd.f32 %v579, %v582
          %v600 = vmax.f32 %v584, 0.0
          %v601 = vmax.f32 %v585, 0.0
          %v602 = vmax.f32 %v586, 0.0
          %v603 = vmax.f32 %v587, 0.0
          %v604 = vmax.f32 %v588, 0.0
          %v605 = vmax.f32 %v589, 0.0
          %v606 = vmax.f32 %v590, 0.0
          %v607 = vmax.f32 %v591, 0.0
          %v608 = vmax.f32 %v592, 0.0
          %v609 = vmax.f32 %v593, 0.0
          %v610 = vmax.f32 %v594, 0.0
          %v611 = vmax.f32 %v595, 0.0
          %v612 = vmax.f32 %v596, 0.0
          %v613 = vmax.f32 %v597, 0.0
          %v614 = vmax.f32 %v598, 0.0
          %v615 = vmax.f32 %v599, 0.0
          %616 = vst [vmem:[%s313] sm:$0xff] %v600
          %617 = vst [vmem:[%s313 + $0x8] sm:$0xff] %v601
          %618 = vst [vmem:[%s313 + $0x10] sm:$0xff] %v602
          %619 = vst [vmem:[%s313 + $0x18] sm:$0xff] %v603
          %620 = vst [vmem:[%s313 + $0x20] sm:$0xff] %v604
          %621 = vst [vmem:[%s313 + $0x28] sm:$0xff] %v605
          %622 = vst [vmem:[%s313 + $0x30] sm:$0xff] %v606
          %623 = vst [vmem:[%s313 + $0x38] sm:$0xff] %v607
          %624 = vst [vmem:[%s313 + $0x40] sm:$0xff] %v608
          %625 = vst [vmem:[%s313 + $0x48] sm:$0xff] %v609
          %626 = vst [vmem:[%s313 + $0x50] sm:$0xff] %v610
          %627 = vst [vmem:[%s313 + $0x58] sm:$0xff] %v611
          %628 = vst [vmem:[%s313 + $0x60] sm:$0xff] %v612
          %629 = vst [vmem:[%s313 + $0x68] sm:$0xff] %v613
          %630 = vst [vmem:[%s313 + $0x70] sm:$0xff] %v614
          %631 = vst [vmem:[%s313 + $0x78] sm:$0xff] %v615
        $region81: #{gconv_forward.7} parent=68 // pred_fallthru
          _
        %s632 = smul.u32 16, %s18
        %p633 = scmp.lt.s32.totalorder %s632, 31
        %s634 = scalar_select %p633, %s632, 31
        %s635 = smul.addr %s634, 8
        %s636 = scalar_lea.vmem %s3, %s635
        // Predicated region
        $region82: #{gconv_forward.7} parent=68 // pred_check
          %p637 = pneg %p119
        $region83: #{gconv_forward.7} parent=68 // pred_check_branch
          %639 = sbr.rel (%p637) target = $region85
        $region84: #{gconv_forward.7} parent=68 // pred_region
          %s640 = smul.u32 16, %s18
        $region85: #{gconv_forward.7} parent=68 // pred_fallthru
          _
      $region69: #{gconv_forward.7} parent=5 // pred_fallthru
        _
      %p641 = scmp.le.s32.totalorder 2, %s9
      // Predicated region
      $region86: #{gconv_forward.7} parent=5 // pred_check
        %p642 = pneg %p641
      $region87: #{gconv_forward.7} parent=5 // pred_check_branch
        %644 = sbr.rel (%p642) target = $region89
      $region88: #{gconv_forward.7} parent=5 // pred_region
        %s645 = ssub.s32 %s9, 2
        // Predicated region
        $region90: #{gconv_forward.7} parent=88 // pred_check
          %p646 = pneg %p125
        $region91: #{gconv_forward.7} parent=88 // pred_check_branch
          %648 = sbr.rel (%p646) target = $region93
        $region92: #{gconv_forward.7} parent=88 // pred_region
          %s649 = smul.u32 16, %s20
          %p650 = scmp.lt.s32.totalorder %s649, 31
          %s651 = scalar_select %p650, %s649, 31
          %s652 = smul.addr %s651, 8
          %s653 = scalar_lea.vmem %s3, %s652
        $region93: #{gconv_forward.7} parent=88 // pred_fallthru
          _
      $region89: #{gconv_forward.7} parent=5 // pred_fallthru
        _
    $region6: #{gconv_forward.7} parent=1 // loop_footer
      %s13 = sadd.s32 1, %s9
    $region7: #{gconv_forward.7} parent=1 // loop_footer_branch
      %8 = sbr.rel target = $region3
    $region8: #{gconv_forward.7} parent=1 // loop_exit
      _

// kernel: gconv_forward.10
$region0: #{gconv_forward.10}
  #allocation0 [shape = 'u32[]', space=smem, size = 0x4, offset = 0x4, fixed_abs, tag = 'smem constant byte address 0x4 - core index']
  #allocation1 [shape = 'u32[72,128]{1,0:T(1,128)}', space=vmem, size = 0x9000, scoped, tag = 'internal scratch']
  %s0 = inlined_call_operand.vmem [shape: bf16[256,128], index: 0, kind: input, shape index: {}]
  %s1 = inlined_call_operand.vmem [shape: bf16[128,128], index: 1, kind: input, shape index: {}]
  %s2 = inlined_call_operand.vmem [shape: f32[1,128], index: 2, kind: input, shape index: {}]
  %s3 = inlined_call_operand.vmem [shape: bf16[128,128], index: 3, kind: input, shape index: {}]
  %s4 = inlined_call_operand.vmem [shape: f32[1,128], index: 4, kind: input, shape index: {}]
  %s5 = inlined_call_operand.vmem [shape: f32[256,128], index: 5, kind: output, shape index: {}]
  %s6 = sld [smem:[#allocation0]]
  $region53: #{gconv_forward.10} parent=0
    _
  %s8 = ssub.s32 1, %s6
  %s9 = scalar_select 0, %s8, %s6
  loop: start=0, step=1, limit=4
  $region2: #{gconv_forward.10} parent=0 // loop_pre_header
    _
  $region3: #{gconv_forward.10} parent=0 // loop_header
    %s11 = sphi 0, %s15
    %p12 = scmp.ge.s32.totalorder %s11, 4
    %s21 = sphi 0, %s23
    %s24 = sphi 0, %s21
    %s25 = sphi 0, %s24
    %s41 = sphi 0, %s25
    %s45 = sphi 0, %s45
    %s47 = sphi 0, %s45
    %s48 = sphi 0, %s47
    %s62 = sphi 0, %s48
    %s66 = sphi 0, %s66
    %s68 = sphi 0, %s66
    %s69 = sphi 0, %s68
    %s83 = sphi 0, %s69
    %s87 = sphi 0, %s87
    %s89 = sphi 0, %s87
    %s90 = sphi 0, %s89
    %s104 = sphi 0, %s90
    %s108 = sphi 0, %s108
    %s110 = sphi 0, %s108
    %s111 = sphi 0, %s110
    %s125 = sphi 0, %s111
    %s131 = sphi 0, %s133
    %s134 = sphi 0, %s131
    %s135 = sphi 0, %s134
    %s151 = sphi 0, %s135
  $region4: #{gconv_forward.10} parent=0 // loop_header_branch
    %14 = sbr.rel (%p12) target = $region8
  $region5: #{gconv_forward.10} parent=0 // loop_body
    %s16 = ssub.s32 %s11, 1
    %s17 = ssub.s32 %s11, 2
    %s18 = sadd.s32 %s11, 1
    %s19 = ssub.s32 %s11, %s18
    %p20 = scmp.eq.s32.totalorder %s19, 0
    %s22 = sadd.s32 %s21, 1
    %s23 = scalar_select %p20, %s21, %s22
    %p26 = pneg %p20
    %p27 = scmp.eq.s32.totalorder %s11, 1
    %p28 = por %p26, %p27
    %p29 = scmp.ne.s32.totalorder %s21, %s24
    %p30 = scmp.eq.s32.totalorder %s11, 0
    %p31 = por %p29, %p30
    %p32 = scmp.ne.s32.totalorder %s21, %s24
    %p33 = scmp.eq.s32.totalorder %s16, 1
    %p34 = por %p32, %p33
    %p35 = scmp.ne.s32.totalorder %s24, %s25
    %p36 = scmp.eq.s32.totalorder %s16, 0
    %p37 = por %p35, %p36
    %p38 = scmp.ne.s32.totalorder %s24, %s25
    %p39 = scmp.eq.s32.totalorder %s17, 1
    %p40 = por %p38, %p39
    %p42 = scmp.ne.s32.totalorder %s25, %s41
    %p43 = scmp.eq.s32.totalorder %s17, 0
    %p44 = por %p42, %p43
    %s46 = sadd.s32 %s45, 1
    %p49 = scmp.eq.s32.totalorder %s11, 1
    %p50 = scmp.ne.s32.totalorder %s45, %s47
    %p51 = scmp.eq.s32.totalorder %s11, 0
    %p52 = por %p50, %p51
    %p53 = scmp.ne.s32.totalorder %s45, %s47
    %p54 = scmp.eq.s32.totalorder %s16, 1
    %p55 = por %p53, %p54
    %p56 = scmp.ne.s32.totalorder %s47, %s48
    %p57 = scmp.eq.s32.totalorder %s16, 0
    %p58 = por %p56, %p57
    %p59 = scmp.ne.s32.totalorder %s47, %s48
    %p60 = scmp.eq.s32.totalorder %s17, 1
    %p61 = por %p59, %p60
    %p63 = scmp.ne.s32.totalorder %s48, %s62
    %p64 = scmp.eq.s32.totalorder %s17, 0
    %p65 = por %p63, %p64
    %s67 = sadd.s32 %s66, 1
    %p70 = scmp.eq.s32.totalorder %s11, 1
    %p71 = scmp.ne.s32.totalorder %s66, %s68
    %p72 = scmp.eq.s32.totalorder %s11, 0
    %p73 = por %p71, %p72
    %p74 = scmp.ne.s32.totalorder %s66, %s68
    %p75 = scmp.eq.s32.totalorder %s16, 1
    %p76 = por %p74, %p75
    %p77 = scmp.ne.s32.totalorder %s68, %s69
    %p78 = scmp.eq.s32.totalorder %s16, 0
    %p79 = por %p77, %p78
    %p80 = scmp.ne.s32.totalorder %s68, %s69
    %p81 = scmp.eq.s32.totalorder %s17, 1
    %p82 = por %p80, %p81
    %p84 = scmp.ne.s32.totalorder %s69, %s83
    %p85 = scmp.eq.s32.totalorder %s17, 0
    %p86 = por %p84, %p85
    %s88 = sadd.s32 %s87, 1
    %p91 = scmp.eq.s32.totalorder %s11, 1
    %p92 = scmp.ne.s32.totalorder %s87, %s89
    %p93 = scmp.eq.s32.totalorder %s11, 0
    %p94 = por %p92, %p93
    %p95 = scmp.ne.s32.totalorder %s87, %s89
    %p96 = scmp.eq.s32.totalorder %s16, 1
    %p97 = por %p95, %p96
    %p98 = scmp.ne.s32.totalorder %s89, %s90
    %p99 = scmp.eq.s32.totalorder %s16, 0
    %p100 = por %p98, %p99
    %p101 = scmp.ne.s32.totalorder %s89, %s90
    %p102 = scmp.eq.s32.totalorder %s17, 1
    %p103 = por %p101, %p102
    %p105 = scmp.ne.s32.totalorder %s90, %s104
    %p106 = scmp.eq.s32.totalorder %s17, 0
    %p107 = por %p105, %p106
    %s109 = sadd.s32 %s108, 1
    %p112 = scmp.eq.s32.totalorder %s11, 1
    %p113 = scmp.ne.s32.totalorder %s108, %s110
    %p114 = scmp.eq.s32.totalorder %s11, 0
    %p115 = por %p113, %p114
    %p116 = scmp.ne.s32.totalorder %s108, %s110
    %p117 = scmp.eq.s32.totalorder %s16, 1
    %p118 = por %p116, %p117
    %p119 = scmp.ne.s32.totalorder %s110, %s111
    %p120 = scmp.eq.s32.totalorder %s16, 0
    %p121 = por %p119, %p120
    %p122 = scmp.ne.s32.totalorder %s110, %s111
    %p123 = scmp.eq.s32.totalorder %s17, 1
    %p124 = por %p122, %p123
    %p126 = scmp.ne.s32.totalorder %s111, %s125
    %p127 = scmp.eq.s32.totalorder %s17, 0
    %p128 = por %p126, %p127
    %s129 = ssub.s32 %s11, %s18
    %p130 = scmp.eq.s32.totalorder %s129, 0
    %s132 = sadd.s32 %s131, 1
    %s133 = scalar_select %p130, %s131, %s132
    %p136 = pneg %p130
    %p137 = scmp.eq.s32.totalorder %s11, 1
    %p138 = por %p136, %p137
    %p139 = scmp.ne.s32.totalorder %s131, %s134
    %p140 = scmp.eq.s32.totalorder %s11, 0
    %p141 = por %p139, %p140
    %p142 = scmp.ne.s32.totalorder %s131, %s134
    %p143 = scmp.eq.s32.totalorder %s16, 1
    %p144 = por %p142, %p143
    %p145 = scmp.ne.s32.totalorder %s134, %s135
    %p146 = scmp.eq.s32.totalorder %s16, 0
    %p147 = por %p145, %p146
    %p148 = scmp.ne.s32.totalorder %s134, %s135
    %p149 = scmp.eq.s32.totalorder %s17, 1
    %p150 = por %p148, %p149
    %p152 = scmp.ne.s32.totalorder %s135, %s151
    %p153 = scmp.eq.s32.totalorder %s17, 0
    %p154 = por %p152, %p153
    %p155 = scmp.le.s32.totalorder 1, %s11
    %p156 = scmp.lt.s32.totalorder %s11, 3
    %p157 = pnand %p155, %p156
    %p158 = pneg %p157
    // Predicated region
    $region9: #{gconv_forward.10} parent=5 // pred_check
      _
    $region10: #{gconv_forward.10} parent=5 // pred_check_branch
      %160 = sbr.rel (%p157) target = $region12
    $region11: #{gconv_forward.10} parent=5 // pred_region
      %s161 = ssub.s32 %s11, 1
      // Predicated region
      $region13: #{gconv_forward.10} parent=11 // pred_check
        %p162 = pneg %p58
      $region14: #{gconv_forward.10} parent=11 // pred_check_branch
        %164 = sbr.rel (%p162) target = $region16
      $region15: #{gconv_forward.10} parent=11 // pred_region
        _
      $region16: #{gconv_forward.10} parent=11 // pred_fallthru
        _
      // Predicated region
      $region17: #{gconv_forward.10} parent=11 // pred_check
        %p165 = pneg %p79
      $region18: #{gconv_forward.10} parent=11 // pred_check_branch
        %167 = sbr.rel (%p165) target = $region20
      $region19: #{gconv_forward.10} parent=11 // pred_region
        _
      $region20: #{gconv_forward.10} parent=11 // pred_fallthru
        _
      // Predicated region
      $region21: #{gconv_forward.10} parent=11 // pred_check
        %p168 = pneg %p100
      $region22: #{gconv_forward.10} parent=11 // pred_check_branch
        %170 = sbr.rel (%p168) target = $region24
      $region23: #{gconv_forward.10} parent=11 // pred_region
        _
      $region24: #{gconv_forward.10} parent=11 // pred_fallthru
        _
      // Predicated region
      $region25: #{gconv_forward.10} parent=11 // pred_check
        %p171 = pneg %p121
      $region26: #{gconv_forward.10} parent=11 // pred_check_branch
        %173 = sbr.rel (%p171) target = $region28
      $region27: #{gconv_forward.10} parent=11 // pred_region
        _
      $region28: #{gconv_forward.10} parent=11 // pred_fallthru
        _
    $region12: #{gconv_forward.10} parent=5 // pred_fallthru
      _
    %p174 = scmp.lt.s32.totalorder %s11, 2
    // Predicated region
    $region29: #{gconv_forward.10} parent=5 // pred_check
      %p175 = pneg %p174
    $region30: #{gconv_forward.10} parent=5 // pred_check_branch
      %177 = sbr.rel (%p175) target = $region32
    $region31: #{gconv_forward.10} parent=5 // pred_region
      // Predicated region
      $region33: #{gconv_forward.10} parent=31 // pred_check
        %p178 = pneg %p31
      $region34: #{gconv_forward.10} parent=31 // pred_check_branch
        %180 = sbr.rel (%p178) target = $region36
      $region35: #{gconv_forward.10} parent=31 // pred_region
        %s181 = smul.u32 16, %s11
        %p182 = scmp.lt.s32.totalorder %s181, 31
        %s183 = scalar_select %p182, %s181, 31
        %s184 = smul.addr %s183, 4
        %s185 = scalar_lea.vmem %s0, %s184
        %s186 = smul.u32 16, %s11
      $region36: #{gconv_forward.10} parent=31 // pred_fallthru
        _
    $region32: #{gconv_forward.10} parent=5 // pred_fallthru
      _
    %p187 = scmp.le.s32.totalorder 1, %s11
    %p188 = scmp.lt.s32.totalorder %s11, 3
    %p189 = pnand %p187, %p188
    %p190 = pneg %p189
    // Predicated region
    $region37: #{gconv_forward.10} parent=5 // pred_check
      _
    $region38: #{gconv_forward.10} parent=5 // pred_check_branch
      %192 = sbr.rel (%p189) target = $region40
    $region39: #{gconv_forward.10} parent=5 // pred_region
      %s193 = ssub.s32 %s11, 1
      %s194 = smul.u32 16, %s16
      %p195 = scmp.lt.s32.totalorder %s194, 31
      %s196 = scalar_select %p195, %s194, 31
      %s197 = smul.addr %s196, 4
      %s198 = scalar_lea.vmem %s0, %s197
      %p199 = pneg %p37
      %p200 = pneg %p34
      %p201 = pneg %p58
      %p202 = pneg %p55
      %p203 = pneg %p79
      %p204 = pneg %p76
      %p205 = pneg %p100
      %p206 = pneg %p97
      %p207 = pneg %p121
      %p208 = pneg %p118
      %p209 = pneg %p147
      %p210 = pneg %p144
      %s211 = smul.u32 16, %s16
      %p212 = scmp.lt.s32.totalorder %s211, 31
      %s213 = scalar_select %p212, %s211, 31
      %s214 = smul.addr %s213, 8
      %s215 = scalar_lea.vmem %s5, %s214
      %s216 = smul.u32 16, %s16
      %p217 = scmp.lt.s32.totalorder %s216, 31
      %s218 = scalar_select %p217, %s216, 31
      %s219 = smul.addr %s218, 4
      %s220 = scalar_lea.vmem %s0, %s219
      %s221 = smul.u32 16, %s16
      %s222 = smul.u32 16, %s16
      %p223 = scmp.lt.s32.totalorder %s222, 31
      %s224 = scalar_select %p223, %s222, 31
      %s225 = smul.addr %s224, 8
      %s226 = scalar_lea.vmem %s5, %s225
      %s227 = smul.u32 16, %s16
      %v228 = vld [vmem:[%s220] sm:$0xf]
      %v229 = vld [vmem:[%s220 + $0x4] sm:$0xf]
      %v230 = vld [vmem:[%s220 + $0x8] sm:$0xf]
      %v231 = vld [vmem:[%s220 + $0xc] sm:$0xf]
      %v232 = vld [vmem:[%s220 + $0x10] sm:$0xf]
      %v233 = vld [vmem:[%s220 + $0x14] sm:$0xf]
      %v234 = vld [vmem:[%s220 + $0x18] sm:$0xf]
      %v235 = vld [vmem:[%s220 + $0x1c] sm:$0xf]
      %v236 = vld [vmem:[%s220 + $0x20] sm:$0xf]
      %v237 = vld [vmem:[%s220 + $0x24] sm:$0xf]
      %v238 = vld [vmem:[%s220 + $0x28] sm:$0xf]
      %v239 = vld [vmem:[%s220 + $0x2c] sm:$0xf]
      %v240 = vld [vmem:[%s220 + $0x30] sm:$0xf]
      %v241 = vld [vmem:[%s220 + $0x34] sm:$0xf]
      %v242 = vld [vmem:[%s220 + $0x38] sm:$0xf]
      %v243 = vld [vmem:[%s220 + $0x3c] sm:$0xf]
      %v244 = vld [vmem:[%s1] sm:$0xf]
      %v245 = vld [vmem:[%s1 + $0x4] sm:$0xf]
      %v246 = vld [vmem:[%s1 + $0x8] sm:$0xf]
      %v247 = vld [vmem:[%s1 + $0xc] sm:$0xf]
      %v248 = vld [vmem:[%s1 + $0x10] sm:$0xf]
      %v249 = vld [vmem:[%s1 + $0x14] sm:$0xf]
      %v250 = vld [vmem:[%s1 + $0x18] sm:$0xf]
      %v251 = vld [vmem:[%s1 + $0x1c] sm:$0xf]
      %v252 = vld [vmem:[%s1 + $0x20] sm:$0xf]
      %v253 = vld [vmem:[%s1 + $0x24] sm:$0xf]
      %v254 = vld [vmem:[%s1 + $0x28] sm:$0xf]
      %v255 = vld [vmem:[%s1 + $0x2c] sm:$0xf]
      %v256 = vld [vmem:[%s1 + $0x30] sm:$0xf]
      %v257 = vld [vmem:[%s1 + $0x34] sm:$0xf]
      %v258 = vld [vmem:[%s1 + $0x38] sm:$0xf]
      %v259 = vld [vmem:[%s1 + $0x3c] sm:$0xf]
      %v260 = vld [vmem:[%s2] sm:$0x1]
      %v262 = vperm.slane %v260, 0
      %v280 = vunpack.c.l.b16 %v228
      %v281 = vunpack.c.l.b16 %v229
      %v282 = vunpack.c.l.b16 %v230
      %v283 = vunpack.c.l.b16 %v231
      %v284 = vunpack.c.l.b16 %v232
      %v285 = vunpack.c.l.b16 %v233
      %v286 = vunpack.c.l.b16 %v234
      %v287 = vunpack.c.l.b16 %v235
      %v288 = vunpack.c.l.b16 %v236
      %v289 = vunpack.c.l.b16 %v237
      %v290 = vunpack.c.l.b16 %v238
      %v291 = vunpack.c.l.b16 %v239
      %v292 = vunpack.c.l.b16 %v240
      %v293 = vunpack.c.l.b16 %v241
      %v294 = vunpack.c.l.b16 %v242
      %v295 = vunpack.c.l.b16 %v243
      %v296 = vpack.c.b16 %v281, %v280
      %v297 = vpack.c.b16 %v283, %v282
      %v298 = vpack.c.b16 %v285, %v284
      %v299 = vpack.c.b16 %v287, %v286
      %v300 = vpack.c.b16 %v289, %v288
      %v301 = vpack.c.b16 %v291, %v290
      %v302 = vpack.c.b16 %v293, %v292
      %v303 = vpack.c.b16 %v295, %v294
      %v328 = vunpack.c.l.b16 %v244
      %v329 = vunpack.c.l.b16 %v245
      %v330 = vunpack.c.l.b16 %v246
      %v331 = vunpack.c.l.b16 %v247
      %v332 = vunpack.c.l.b16 %v248
      %v333 = vunpack.c.l.b16 %v249
      %v334 = vunpack.c.l.b16 %v250
      %v335 = vunpack.c.l.b16 %v251
      %v336 = vunpack.c.l.b16 %v252
      %v337 = vunpack.c.l.b16 %v253
      %v338 = vunpack.c.l.b16 %v254
      %v339 = vunpack.c.l.b16 %v255
      %v340 = vunpack.c.l.b16 %v256
      %v341 = vunpack.c.l.b16 %v257
      %v342 = vunpack.c.l.b16 %v258
      %v343 = vunpack.c.l.b16 %v259
      %v344 = vpack.c.b16 %v329, %v328
      %v345 = vpack.c.b16 %v331, %v330
      %v346 = vpack.c.b16 %v333, %v332
      %v347 = vpack.c.b16 %v335, %v334
      %v348 = vpack.c.b16 %v337, %v336
      %v349 = vpack.c.b16 %v339, %v338
      %v350 = vpack.c.b16 %v341, %v340
      %v351 = vpack.c.b16 %v343, %v342
      %360 = vmatpush.bf16.msra.mxu0 %v351
      %361 = vmatpush.bf16.msra.mxu0 %v350
      %362 = vmatpush.bf16.msra.mxu0 %v349
      %363 = vmatpush.bf16.msra.mxu0 %v348
      %364 = vmatpush.bf16.msra.mxu0 %v347
      %365 = vmatpush.bf16.msra.mxu0 %v346
      %366 = vmatpush.bf16.msra.mxu0 %v345
      %367 = vmatpush.bf16.msra.mxu0 %v344
      %368 = vmatmul.bf16.gmra.mxu0 %v296
      %v369 = vpop.f32.mrf.mxu0
      %v370 = vadd.f32 %v262, %v369
      %v371 = vpop.f32.mrf.mxu0
      %v372 = vadd.f32 %v262, %v371
      %373 = vmatmul.bf16.gmra.mxu0 %v297
      %v374 = vpop.f32.mrf.mxu0
      %v375 = vadd.f32 %v262, %v374
      %v376 = vpop.f32.mrf.mxu0
      %v377 = vadd.f32 %v262, %v376
      %378 = vmatmul.bf16.gmra.mxu0 %v298
      %v379 = vpop.f32.mrf.mxu0
      %v380 = vadd.f32 %v262, %v379
      %v381 = vpop.f32.mrf.mxu0
      %v382 = vadd.f32 %v262, %v381
      %383 = vmatmul.bf16.gmra.mxu0 %v299
      %v384 = vpop.f32.mrf.mxu0
      %v385 = vadd.f32 %v262, %v384
      %v386 = vpop.f32.mrf.mxu0
      %v387 = vadd.f32 %v262, %v386
      %388 = vmatmul.bf16.gmra.mxu0 %v300
      %v389 = vpop.f32.mrf.mxu0
      %v390 = vadd.f32 %v262, %v389
      %v391 = vpop.f32.mrf.mxu0
      %v392 = vadd.f32 %v262, %v391
      %393 = vmatmul.bf16.gmra.mxu0 %v301
      %v394 = vpop.f32.mrf.mxu0
      %v395 = vadd.f32 %v262, %v394
      %v396 = vpop.f32.mrf.mxu0
      %v397 = vadd.f32 %v262, %v396
      %398 = vmatmul.bf16.gmra.mxu0 %v302
      %v399 = vpop.f32.mrf.mxu0
      %v400 = vadd.f32 %v262, %v399
      %v401 = vpop.f32.mrf.mxu0
      %v402 = vadd.f32 %v262, %v401
      %403 = vmatmul.bf16.gmra.mxu0 %v303
      %v404 = vpop.f32.mrf.mxu0
      %v405 = vadd.f32 %v262, %v404
      %v406 = vpop.f32.mrf.mxu0
      %v407 = vadd.f32 %v262, %v406
      %408 = vdwg.mxu0
      %v409 = vmax.f32 %v370, 0.0
      %v410 = vmax.f32 %v372, 0.0
      %v411 = vmax.f32 %v375, 0.0
      %v412 = vmax.f32 %v377, 0.0
      %v413 = vmax.f32 %v380, 0.0
      %v414 = vmax.f32 %v382, 0.0
      %v415 = vmax.f32 %v385, 0.0
      %v416 = vmax.f32 %v387, 0.0
      %v417 = vmax.f32 %v390, 0.0
      %v418 = vmax.f32 %v392, 0.0
      %v419 = vmax.f32 %v395, 0.0
      %v420 = vmax.f32 %v397, 0.0
      %v421 = vmax.f32 %v400, 0.0
      %v422 = vmax.f32 %v402, 0.0
      %v423 = vmax.f32 %v405, 0.0
      %v424 = vmax.f32 %v407, 0.0
      %v425 = vpack.c.bf16 %v410, %v409
      %v426 = vpack.c.bf16 %v412, %v411
      %v427 = vpack.c.bf16 %v414, %v413
      %v428 = vpack.c.bf16 %v416, %v415
      %v429 = vpack.c.bf16 %v418, %v417
      %v430 = vpack.c.bf16 %v420, %v419
      %v431 = vpack.c.bf16 %v422, %v421
      %v432 = vpack.c.bf16 %v424, %v423
      %v433 = vld [vmem:[%s3] sm:$0xf]
      %v434 = vld [vmem:[%s3 + $0x4] sm:$0xf]
      %v435 = vld [vmem:[%s3 + $0x8] sm:$0xf]
      %v436 = vld [vmem:[%s3 + $0xc] sm:$0xf]
      %v437 = vld [vmem:[%s3 + $0x10] sm:$0xf]
      %v438 = vld [vmem:[%s3 + $0x14] sm:$0xf]
      %v439 = vld [vmem:[%s3 + $0x18] sm:$0xf]
      %v440 = vld [vmem:[%s3 + $0x1c] sm:$0xf]
      %v441 = vld [vmem:[%s3 + $0x20] sm:$0xf]
      %v442 = vld [vmem:[%s3 + $0x24] sm:$0xf]
      %v443 = vld [vmem:[%s3 + $0x28] sm:$0xf]
      %v444 = vld [vmem:[%s3 + $0x2c] sm:$0xf]
      %v445 = vld [vmem:[%s3 + $0x30] sm:$0xf]
      %v446 = vld [vmem:[%s3 + $0x34] sm:$0xf]
      %v447 = vld [vmem:[%s3 + $0x38] sm:$0xf]
      %v448 = vld [vmem:[%s3 + $0x3c] sm:$0xf]
      %v449 = vld [vmem:[%s4] sm:$0x1]
      %v451 = vperm.slane %v449, 0
      %v469 = vunpack.c.l.b16 %v433
      %v470 = vunpack.c.l.b16 %v434
      %v471 = vunpack.c.l.b16 %v435
      %v472 = vunpack.c.l.b16 %v436
      %v473 = vunpack.c.l.b16 %v437
      %v474 = vunpack.c.l.b16 %v438
      %v475 = vunpack.c.l.b16 %v439
      %v476 = vunpack.c.l.b16 %v440
      %v477 = vunpack.c.l.b16 %v441
      %v478 = vunpack.c.l.b16 %v442
      %v479 = vunpack.c.l.b16 %v443
      %v480 = vunpack.c.l.b16 %v444
      %v481 = vunpack.c.l.b16 %v445
      %v482 = vunpack.c.l.b16 %v446
      %v483 = vunpack.c.l.b16 %v447
      %v484 = vunpack.c.l.b16 %v448
      %v485 = vpack.c.b16 %v470, %v469
      %v486 = vpack.c.b16 %v472, %v471
      %v487 = vpack.c.b16 %v474, %v473
      %v488 = vpack.c.b16 %v476, %v475
      %v489 = vpack.c.b16 %v478, %v477
      %v490 = vpack.c.b16 %v480, %v479
      %v491 = vpack.c.b16 %v482, %v481
      %v492 = vpack.c.b16 %v484, %v483
      %501 = vmatpush.bf16.msra.mxu0 %v492
      %502 = vmatpush.bf16.msra.mxu0 %v491
      %503 = vmatpush.bf16.msra.mxu0 %v490
      %504 = vmatpush.bf16.msra.mxu0 %v489
      %505 = vmatpush.bf16.msra.mxu0 %v488
      %506 = vmatpush.bf16.msra.mxu0 %v487
      %507 = vmatpush.bf16.msra.mxu0 %v486
      %508 = vmatpush.bf16.msra.mxu0 %v485
      %509 = vmatmul.bf16.gmra.mxu0 %v425
      %v510 = vpop.f32.mrf.mxu0
      %v511 = vadd.f32 %v451, %v510
      %v512 = vpop.f32.mrf.mxu0
      %v513 = vadd.f32 %v451, %v512
      %514 = vmatmul.bf16.gmra.mxu0 %v426
      %v515 = vpop.f32.mrf.mxu0
      %v516 = vadd.f32 %v451, %v515
      %v517 = vpop.f32.mrf.mxu0
      %v518 = vadd.f32 %v451, %v517
      %519 = vmatmul.bf16.gmra.mxu0 %v427
      %v520 = vpop.f32.mrf.mxu0
      %v521 = vadd.f32 %v451, %v520
      %v522 = vpop.f32.mrf.mxu0
      %v523 = vadd.f32 %v451, %v522
      %524 = vmatmul.bf16.gmra.mxu0 %v428
      %v525 = vpop.f32.mrf.mxu0
      %v526 = vadd.f32 %v451, %v525
      %v527 = vpop.f32.mrf.mxu0
      %v528 = vadd.f32 %v451, %v527
      %529 = vmatmul.bf16.gmra.mxu0 %v429
      %v530 = vpop.f32.mrf.mxu0
      %v531 = vadd.f32 %v451, %v530
      %v532 = vpop.f32.mrf.mxu0
      %v533 = vadd.f32 %v451, %v532
      %534 = vmatmul.bf16.gmra.mxu0 %v430
      %v535 = vpop.f32.mrf.mxu0
      %v536 = vadd.f32 %v451, %v535
      %v537 = vpop.f32.mrf.mxu0
      %v538 = vadd.f32 %v451, %v537
      %539 = vmatmul.bf16.gmra.mxu0 %v431
      %v540 = vpop.f32.mrf.mxu0
      %v541 = vadd.f32 %v451, %v540
      %v542 = vpop.f32.mrf.mxu0
      %v543 = vadd.f32 %v451, %v542
      %544 = vmatmul.bf16.gmra.mxu0 %v432
      %v545 = vpop.f32.mrf.mxu0
      %v546 = vadd.f32 %v451, %v545
      %v547 = vpop.f32.mrf.mxu0
      %v548 = vadd.f32 %v451, %v547
      %549 = vdwg.mxu0
      %550 = vst [vmem:[%s226] sm:$0xff] %v511
      %551 = vst [vmem:[%s226 + $0x8] sm:$0xff] %v513
      %552 = vst [vmem:[%s226 + $0x10] sm:$0xff] %v516
      %553 = vst [vmem:[%s226 + $0x18] sm:$0xff] %v518
      %554 = vst [vmem:[%s226 + $0x20] sm:$0xff] %v521
      %555 = vst [vmem:[%s226 + $0x28] sm:$0xff] %v523
      %556 = vst [vmem:[%s226 + $0x30] sm:$0xff] %v526
      %557 = vst [vmem:[%s226 + $0x38] sm:$0xff] %v528
      %558 = vst [vmem:[%s226 + $0x40] sm:$0xff] %v531
      %559 = vst [vmem:[%s226 + $0x48] sm:$0xff] %v533
      %560 = vst [vmem:[%s226 + $0x50] sm:$0xff] %v536
      %561 = vst [vmem:[%s226 + $0x58] sm:$0xff] %v538
      %562 = vst [vmem:[%s226 + $0x60] sm:$0xff] %v541
      %563 = vst [vmem:[%s226 + $0x68] sm:$0xff] %v543
      %564 = vst [vmem:[%s226 + $0x70] sm:$0xff] %v546
      %565 = vst [vmem:[%s226 + $0x78] sm:$0xff] %v548
      %s566 = smul.u32 16, %s16
      %p567 = scmp.lt.s32.totalorder %s566, 31
      %s568 = scalar_select %p567, %s566, 31
      %s569 = smul.addr %s568, 8
      %s570 = scalar_lea.vmem %s5, %s569
      // Predicated region
      $region41: #{gconv_forward.10} parent=39 // pred_check
        %p571 = pneg %p144
      $region42: #{gconv_forward.10} parent=39 // pred_check_branch
        %573 = sbr.rel (%p571) target = $region44
      $region43: #{gconv_forward.10} parent=39 // pred_region
        %s574 = smul.u32 16, %s16
      $region44: #{gconv_forward.10} parent=39 // pred_fallthru
        _
    $region40: #{gconv_forward.10} parent=5 // pred_fallthru
      _
    %p575 = scmp.le.s32.totalorder 2, %s11
    // Predicated region
    $region45: #{gconv_forward.10} parent=5 // pred_check
      %p576 = pneg %p575
    $region46: #{gconv_forward.10} parent=5 // pred_check_branch
      %578 = sbr.rel (%p576) target = $region48
    $region47: #{gconv_forward.10} parent=5 // pred_region
      %s579 = ssub.s32 %s11, 2
      // Predicated region
      $region49: #{gconv_forward.10} parent=47 // pred_check
        %p580 = pneg %p150
      $region50: #{gconv_forward.10} parent=47 // pred_check_branch
        %582 = sbr.rel (%p580) target = $region52
      $region51: #{gconv_forward.10} parent=47 // pred_region
        %s583 = smul.u32 16, %s17
        %p584 = scmp.lt.s32.totalorder %s583, 31
        %s585 = scalar_select %p584, %s583, 31
        %s586 = smul.addr %s585, 8
        %s587 = scalar_lea.vmem %s5, %s586
      $region52: #{gconv_forward.10} parent=47 // pred_fallthru
        _
    $region48: #{gconv_forward.10} parent=5 // pred_fallthru
      _
  $region6: #{gconv_forward.10} parent=0 // loop_footer
    %s15 = sadd.s32 1, %s11
  $region7: #{gconv_forward.10} parent=0 // loop_footer_branch
    %10 = sbr.rel target = $region3
  $region8: #{gconv_forward.10} parent=0 // loop_exit
    _

// kernel: gconv_forward.11
$region0: #{gconv_forward.11}
  #allocation0 [shape = 'u32[]', space=smem, size = 0x4, offset = 0x4, fixed_abs, tag = 'smem constant byte address 0x4 - core index']
  #allocation1 [shape = 'u32[72,128]{1,0:T(1,128)}', space=vmem, size = 0x9000, scoped, tag = 'internal scratch']
  #allocation2 [shape = 'f32[8,384]{1,0:T(8,128)}', space=vmem, size = 0x3000, scoped, tag = 'scratch operand']
  %s0 = inlined_call_operand.vmem [shape: bf16[8,256], index: 0, kind: input, shape index: {}]
  %s1 = inlined_call_operand.vmem [shape: bf16[256,384], index: 1, kind: input, shape index: {}]
  %s2 = inlined_call_operand.vmem [shape: f32[8,384], index: 2, kind: output, shape index: {}]
  %s3 = sld [smem:[#allocation0]]
  $region49: #{gconv_forward.11} parent=0
    _
  %s5 = ssub.s32 1, %s3
  %s6 = scalar_select 0, %s5, %s3
  loop: start=0, step=1, limit=4
  $region2: #{gconv_forward.11} parent=0 // loop_pre_header
    _
  $region3: #{gconv_forward.11} parent=0 // loop_header
    %s8 = sphi 0, %s12
    %p9 = scmp.ge.s32.totalorder %s8, 4
    %s18 = sphi 0, %s20
    %s21 = sphi 0, %s18
    %s22 = sphi 0, %s21
    %s38 = sphi 0, %s22
    %s44 = sphi 0, %s46
    %s47 = sphi 0, %s44
    %s48 = sphi 0, %s47
    %s64 = sphi 0, %s48
    %s68 = sphi 0, %s68
    %s70 = sphi 0, %s68
    %s71 = sphi 0, %s70
    %s85 = sphi 0, %s71
  $region4: #{gconv_forward.11} parent=0 // loop_header_branch
    %11 = sbr.rel (%p9) target = $region8
  $region5: #{gconv_forward.11} parent=0 // loop_body
    %s13 = ssub.s32 %s8, 1
    %s14 = ssub.s32 %s8, 2
    %s15 = sadd.s32 %s8, 1
    %s16 = ssub.s32 %s8, %s15
    %p17 = scmp.eq.s32.totalorder %s16, 0
    %s19 = sadd.s32 %s18, 1
    %s20 = scalar_select %p17, %s18, %s19
    %p23 = pneg %p17
    %p24 = scmp.eq.s32.totalorder %s8, 1
    %p25 = por %p23, %p24
    %p26 = scmp.ne.s32.totalorder %s18, %s21
    %p27 = scmp.eq.s32.totalorder %s8, 0
    %p28 = por %p26, %p27
    %p29 = scmp.ne.s32.totalorder %s18, %s21
    %p30 = scmp.eq.s32.totalorder %s13, 1
    %p31 = por %p29, %p30
    %p32 = scmp.ne.s32.totalorder %s21, %s22
    %p33 = scmp.eq.s32.totalorder %s13, 0
    %p34 = por %p32, %p33
    %p35 = scmp.ne.s32.totalorder %s21, %s22
    %p36 = scmp.eq.s32.totalorder %s14, 1
    %p37 = por %p35, %p36
    %p39 = scmp.ne.s32.totalorder %s22, %s38
    %p40 = scmp.eq.s32.totalorder %s14, 0
    %p41 = por %p39, %p40
    %s42 = ssub.s32 %s8, %s15
    %p43 = scmp.eq.s32.totalorder %s42, 0
    %s45 = sadd.s32 %s44, 1
    %s46 = scalar_select %p43, %s44, %s45
    %p49 = pneg %p43
    %p50 = scmp.eq.s32.totalorder %s8, 1
    %p51 = por %p49, %p50
    %p52 = scmp.ne.s32.totalorder %s44, %s47
    %p53 = scmp.eq.s32.totalorder %s8, 0
    %p54 = por %p52, %p53
    %p55 = scmp.ne.s32.totalorder %s44, %s47
    %p56 = scmp.eq.s32.totalorder %s13, 1
    %p57 = por %p55, %p56
    %p58 = scmp.ne.s32.totalorder %s47, %s48
    %p59 = scmp.eq.s32.totalorder %s13, 0
    %p60 = por %p58, %p59
    %p61 = scmp.ne.s32.totalorder %s47, %s48
    %p62 = scmp.eq.s32.totalorder %s14, 1
    %p63 = por %p61, %p62
    %p65 = scmp.ne.s32.totalorder %s48, %s64
    %p66 = scmp.eq.s32.totalorder %s14, 0
    %p67 = por %p65, %p66
    %s69 = sadd.s32 %s68, 1
    %p72 = scmp.eq.s32.totalorder %s8, 1
    %p73 = scmp.ne.s32.totalorder %s68, %s70
    %p74 = scmp.eq.s32.totalorder %s8, 0
    %p75 = por %p73, %p74
    %p76 = scmp.ne.s32.totalorder %s68, %s70
    %p77 = scmp.eq.s32.totalorder %s13, 1
    %p78 = por %p76, %p77
    %p79 = scmp.ne.s32.totalorder %s70, %s71
    %p80 = scmp.eq.s32.totalorder %s13, 0
    %p81 = por %p79, %p80
    %p82 = scmp.ne.s32.totalorder %s70, %s71
    %p83 = scmp.eq.s32.totalorder %s14, 1
    %p84 = por %p82, %p83
    %p86 = scmp.ne.s32.totalorder %s71, %s85
    %p87 = scmp.eq.s32.totalorder %s14, 0
    %p88 = por %p86, %p87
    %p89 = scmp.le.s32.totalorder 1, %s8
    %p90 = scmp.lt.s32.totalorder %s8, 3
    %p91 = pnand %p89, %p90
    %p92 = pneg %p91
    // Predicated region
    $region9: #{gconv_forward.11} parent=5 // pred_check
      _
    $region10: #{gconv_forward.11} parent=5 // pred_check_branch
      %94 = sbr.rel (%p91) target = $region12
    $region11: #{gconv_forward.11} parent=5 // pred_region
      %s95 = ssub.s32 %s8, 1
    $region12: #{gconv_forward.11} parent=5 // pred_fallthru
      _
    %p96 = scmp.lt.s32.totalorder %s8, 2
    // Predicated region
    $region13: #{gconv_forward.11} parent=5 // pred_check
      %p97 = pneg %p96
    $region14: #{gconv_forward.11} parent=5 // pred_check_branch
      %99 = sbr.rel (%p97) target = $region16
    $region15: #{gconv_forward.11} parent=5 // pred_region
      // Predicated region
      $region17: #{gconv_forward.11} parent=15 // pred_check
        %p100 = pneg %p28
      $region18: #{gconv_forward.11} parent=15 // pred_check_branch
        %102 = sbr.rel (%p100) target = $region20
      $region19: #{gconv_forward.11} parent=15 // pred_region
        %p103 = scmp.lt.s32.totalorder %s8, 1
        %s104 = scalar_select %p103, %s8, 1
        %s105 = smul.addr %s104, 4
        %s106 = scalar_lea.vmem %s0, %s105
      $region20: #{gconv_forward.11} parent=15 // pred_fallthru
        _
      // Predicated region
      $region21: #{gconv_forward.11} parent=15 // pred_check
        %p107 = pneg %p54
      $region22: #{gconv_forward.11} parent=15 // pred_check_branch
        %109 = sbr.rel (%p107) target = $region24
      $region23: #{gconv_forward.11} parent=15 // pred_region
        %s110 = smul.u32 16, %s8
        %p111 = scmp.lt.s32.totalorder %s110, 31
        %s112 = scalar_select %p111, %s110, 31
        %s113 = smul.addr %s112, 3
        %s114 = smul.addr %s113, 4
        %s115 = scalar_lea.vmem %s1, %s114
        %s116 = smul.u32 16, %s8
      $region24: #{gconv_forward.11} parent=15 // pred_fallthru
        _
    $region16: #{gconv_forward.11} parent=5 // pred_fallthru
      _
    %p117 = scmp.le.s32.totalorder 1, %s8
    %p118 = scmp.lt.s32.totalorder %s8, 3
    %p119 = pnand %p117, %p118
    %p120 = pneg %p119
    // Predicated region
    $region25: #{gconv_forward.11} parent=5 // pred_check
      _
    $region26: #{gconv_forward.11} parent=5 // pred_check_branch
      %122 = sbr.rel (%p119) target = $region28
    $region27: #{gconv_forward.11} parent=5 // pred_region
      %s123 = ssub.s32 %s8, 1
      %p124 = scmp.lt.s32.totalorder %s13, 1
      %s125 = scalar_select %p124, %s13, 1
      %s126 = smul.addr %s125, 4
      %s127 = scalar_lea.vmem %s0, %s126
      %p128 = pneg %p34
      %p129 = pneg %p31
      %s130 = smul.u32 16, %s13
      %p131 = scmp.lt.s32.totalorder %s130, 31
      %s132 = scalar_select %p131, %s130, 31
      %s133 = smul.addr %s132, 3
      %s134 = smul.addr %s133, 4
      %s135 = scalar_lea.vmem %s1, %s134
      %p136 = pneg %p60
      %p137 = pneg %p57
      %p138 = pneg %p81
      %p139 = pneg %p78
      %p140 = scmp.lt.s32.totalorder %s13, 1
      %s141 = scalar_select %p140, %s13, 1
      %s142 = smul.addr %s141, 4
      %s143 = scalar_lea.vmem %s0, %s142
      %s144 = smul.u32 16, %s13
      %p145 = scmp.lt.s32.totalorder %s144, 31
      %s146 = scalar_select %p145, %s144, 31
      %s147 = smul.addr %s146, 3
      %s148 = smul.addr %s147, 4
      %s149 = scalar_lea.vmem %s1, %s148
      %s150 = smul.u32 16, %s13
      %p151 = scmp.eq.s32.totalorder %s13, 0
      // Predicated region
      $region29: #{gconv_forward.11} parent=27 // pred_check
        %p152 = pneg %p151
      $region30: #{gconv_forward.11} parent=27 // pred_check_branch
        %154 = sbr.rel (%p152) target = $region32
      $region31: #{gconv_forward.11} parent=27 // pred_region
        %155 = vst [vmem:[#allocation2] sm:$0xff] 0.0
        %156 = vst [vmem:[#allocation2 + $0x8] sm:$0xff] 0.0
        %157 = vst [vmem:[#allocation2 + $0x10] sm:$0xff] 0.0
      $region32: #{gconv_forward.11} parent=27 // pred_fallthru
        _
      %v158 = vld [vmem:[#allocation2] sm:$0xff]
      %v159 = vld [vmem:[#allocation2 + $0x8] sm:$0xff]
      %v160 = vld [vmem:[#allocation2 + $0x10] sm:$0xff]
      %v161 = vld [vmem:[%s143] sm:$0xf]
      %v162 = vld [vmem:[%s149] sm:$0xff]
      %v163 = vld [vmem:[%s149 + $0x8] sm:$0xf]
      %v164 = vld [vmem:[%s149 + $0xc] sm:$0xff]
      %v165 = vld [vmem:[%s149 + $0x14] sm:$0xf]
      %v166 = vld [vmem:[%s149 + $0x18] sm:$0xff]
      %v167 = vld [vmem:[%s149 + $0x20] sm:$0xf]
      %v168 = vld [vmem:[%s149 + $0x24] sm:$0xff]
      %v169 = vld [vmem:[%s149 + $0x2c] sm:$0xf]
      %v170 = vld [vmem:[%s149 + $0x30] sm:$0xff]
      %v171 = vld [vmem:[%s149 + $0x38] sm:$0xf]
      %v172 = vld [vmem:[%s149 + $0x3c] sm:$0xff]
      %v173 = vld [vmem:[%s149 + $0x44] sm:$0xf]
      %v174 = vld [vmem:[%s149 + $0x48] sm:$0xff]
      %v175 = vld [vmem:[%s149 + $0x50] sm:$0xf]
      %v176 = vld [vmem:[%s149 + $0x54] sm:$0xff]
      %v177 = vld [vmem:[%s149 + $0x5c] sm:$0xf]
      %v178 = vld [vmem:[%s149 + $0x60] sm:$0xff]
      %v179 = vld [vmem:[%s149 + $0x68] sm:$0xf]
      %v180 = vld [vmem:[%s149 + $0x6c] sm:$0xff]
      %v181 = vld [vmem:[%s149 + $0x74] sm:$0xf]
      %v182 = vld [vmem:[%s149 + $0x78] sm:$0xff]
      %v183 = vld [vmem:[%s149 + $0x80] sm:$0xf]
      %v184 = vld [vmem:[%s149 + $0x84] sm:$0xff]
      %v185 = vld [vmem:[%s149 + $0x8c] sm:$0xf]
      %v186 = vld [vmem:[%s149 + $0x90] sm:$0xff]
      %v187 = vld [vmem:[%s149 + $0x98] sm:$0xf]
      %v188 = vld [vmem:[%s149 + $0x9c] sm:$0xff]
      %v189 = vld [vmem:[%s149 + $0xa4] sm:$0xf]
      %v190 = vld [vmem:[%s149 + $0xa8] sm:$0xff]
      %v191 = vld [vmem:[%s149 + $0xb0] sm:$0xf]
      %v192 = vld [vmem:[%s149 + $0xb4] sm:$0xff]
      %v193 = vld [vmem:[%s149 + $0xbc] sm:$0xf]
      %v226 = vunpack.c.l.b16 %v162
      %v227 = vunpack.c.h.b16 %v162
      %v228 = vunpack.c.l.b16 %v163
      %v229 = vunpack.c.l.b16 %v164
      %v230 = vunpack.c.h.b16 %v164
      %v231 = vunpack.c.l.b16 %v165
      %v232 = vunpack.c.l.b16 %v166
      %v233 = vunpack.c.h.b16 %v166
      %v234 = vunpack.c.l.b16 %v167
      %v235 = vunpack.c.l.b16 %v168
      %v236 = vunpack.c.h.b16 %v168
      %v237 = vunpack.c.l.b16 %v169
      %v238 = vunpack.c.l.b16 %v170
      %v239 = vunpack.c.h.b16 %v170
      %v240 = vunpack.c.l.b16 %v171
      %v241 = vunpack.c.l.b16 %v172
      %v242 = vunpack.c.h.b16 %v172
      %v243 = vunpack.c.l.b16 %v173
      %v244 = vunpack.c.l.b16 %v174
      %v245 = vunpack.c.h.b16 %v174
      %v246 = vunpack.c.l.b16 %v175
      %v247 = vunpack.c.l.b16 %v176
      %v248 = vunpack.c.h.b16 %v176
      %v249 = vunpack.c.l.b16 %v177
      %v250 = vunpack.c.l.b16 %v178
      %v251 = vunpack.c.h.b16 %v178
      %v252 = vunpack.c.l.b16 %v179
      %v253 = vunpack.c.l.b16 %v180
      %v254 = vunpack.c.h.b16 %v180
      %v255 = vunpack.c.l.b16 %v181
      %v256 = vunpack.c.l.b16 %v182
      %v257 = vunpack.c.h.b16 %v182
      %v258 = vunpack.c.l.b16 %v183
      %v259 = vunpack.c.l.b16 %v184
      %v260 = vunpack.c.h.b16 %v184
      %v261 = vunpack.c.l.b16 %v185
      %v262 = vunpack.c.l.b16 %v186
      %v263 = vunpack.c.h.b16 %v186
      %v264 = vunpack.c.l.b16 %v187
      %v265 = vunpack.c.l.b16 %v188
      %v266 = vunpack.c.h.b16 %v188
      %v267 = vunpack.c.l.b16 %v189
      %v268 = vunpack.c.l.b16 %v190
      %v269 = vunpack.c.h.b16 %v190
      %v270 = vunpack.c.l.b16 %v191
      %v271 = vunpack.c.l.b16 %v192
      %v272 = vunpack.c.h.b16 %v192
      %v273 = vunpack.c.l.b16 %v193
      %v274 = vpack.c.b16 %v229, %v226
      %v275 = vpack.c.b16 %v230, %v227
      %v276 = vpack.c.b16 %v231, %v228
      %v277 = vpack.c.b16 %v235, %v232
      %v278 = vpack.c.b16 %v236, %v233
      %v279 = vpack.c.b16 %v237, %v234
      %v280 = vpack.c.b16 %v241, %v238
      %v281 = vpack.c.b16 %v242, %v239
      %v282 = vpack.c.b16 %v243, %v240
      %v283 = vpack.c.b16 %v247, %v244
      %v284 = vpack.c.b16 %v248, %v245
      %v285 = vpack.c.b16 %v249, %v246
      %v286 = vpack.c.b16 %v253, %v250
      %v287 = vpack.c.b16 %v254, %v251
      %v288 = vpack.c.b16 %v255, %v252
      %v289 = vpack.c.b16 %v259, %v256
      %v290 = vpack.c.b16 %v260, %v257
      %v291 = vpack.c.b16 %v261, %v258
      %v292 = vpack.c.b16 %v265, %v262
      %v293 = vpack.c.b16 %v266, %v263
      %v294 = vpack.c.b16 %v267, %v264
      %v295 = vpack.c.b16 %v271, %v268
      %v296 = vpack.c.b16 %v272, %v269
      %v297 = vpack.c.b16 %v273, %v270
      %322 = vmatpush.bf16.msra.mxu0 %v295
      %323 = vmatpush.bf16.msra.mxu0 %v292
      %324 = vmatpush.bf16.msra.mxu0 %v289
      %325 = vmatpush.bf16.msra.mxu0 %v286
      %326 = vmatpush.bf16.msra.mxu0 %v283
      %327 = vmatpush.bf16.msra.mxu0 %v280
      %328 = vmatpush.bf16.msra.mxu0 %v277
      %329 = vmatpush.bf16.msra.mxu0 %v274
      %330 = vmatmul.bf16.gmra.mxu0 %v161
      %v331 = vpop.f32.mrf.mxu0
      %v332 = vadd.f32 0.0, %v331
      %v333 = vpop.f32.mrf.mxu0
      %334 = vdwg.mxu0
      %335 = vmatpush.bf16.msra.mxu0 %v296
      %336 = vmatpush.bf16.msra.mxu0 %v293
      %337 = vmatpush.bf16.msra.mxu0 %v290
      %338 = vmatpush.bf16.msra.mxu0 %v287
      %339 = vmatpush.bf16.msra.mxu0 %v284
      %340 = vmatpush.bf16.msra.mxu0 %v281
      %341 = vmatpush.bf16.msra.mxu0 %v278
      %342 = vmatpush.bf16.msra.mxu0 %v275
      %343 = vmatmul.bf16.gmra.mxu0 %v161
      %v344 = vpop.f32.mrf.mxu0
      %v345 = vadd.f32 0.0, %v344
      %v346 = vpop.f32.mrf.mxu0
      %347 = vdwg.mxu0
      %348 = vmatpush.bf16.msra.mxu0 %v297
      %349 = vmatpush.bf16.msra.mxu0 %v294
      %350 = vmatpush.bf16.msra.mxu0 %v291
      %351 = vmatpush.bf16.msra.mxu0 %v288
      %352 = vmatpush.bf16.msra.mxu0 %v285
      %353 = vmatpush.bf16.msra.mxu0 %v282
      %354 = vmatpush.bf16.msra.mxu0 %v279
      %355 = vmatpush.bf16.msra.mxu0 %v276
      %356 = vmatmul.bf16.gmra.mxu0 %v161
      %v357 = vpop.f32.mrf.mxu0
      %v358 = vadd.f32 0.0, %v357
      %v359 = vpop.f32.mrf.mxu0
      %360 = vdwg.mxu0
      %v361 = vadd.f32 %v158, %v332
      %v362 = vadd.f32 %v159, %v345
      %v363 = vadd.f32 %v160, %v358
      %364 = vst [vmem:[#allocation2] sm:$0xff] %v361
      %365 = vst [vmem:[#allocation2 + $0x8] sm:$0xff] %v362
      %366 = vst [vmem:[#allocation2 + $0x10] sm:$0xff] %v363
      %p367 = scmp.eq.s32.totalorder %s13, 1
      // Predicated region
      $region33: #{gconv_forward.11} parent=27 // pred_check
        %p368 = pneg %p367
      $region34: #{gconv_forward.11} parent=27 // pred_check_branch
        %370 = sbr.rel (%p368) target = $region36
      $region35: #{gconv_forward.11} parent=27 // pred_region
        %v371 = vld [vmem:[#allocation2] sm:$0xff]
        %v372 = vld [vmem:[#allocation2 + $0x8] sm:$0xff]
        %v373 = vld [vmem:[#allocation2 + $0x10] sm:$0xff]
        %374 = vst [vmem:[%s2] sm:$0xff] %v371
        %375 = vst [vmem:[%s2 + $0x8] sm:$0xff] %v372
        %376 = vst [vmem:[%s2 + $0x10] sm:$0xff] %v373
      $region36: #{gconv_forward.11} parent=27 // pred_fallthru
        _
      // Predicated region
      $region37: #{gconv_forward.11} parent=27 // pred_check
        %p377 = pneg %p78
      $region38: #{gconv_forward.11} parent=27 // pred_check_branch
        %379 = sbr.rel (%p377) target = $region40
      $region39: #{gconv_forward.11} parent=27 // pred_region
        _
      $region40: #{gconv_forward.11} parent=27 // pred_fallthru
        _
      // Predicated region
      $region41: #{gconv_forward.11} parent=27 // pred_check
        %p380 = pneg %p78
      $region42: #{gconv_forward.11} parent=27 // pred_check_branch
        %382 = sbr.rel (%p380) target = $region44
      $region43: #{gconv_forward.11} parent=27 // pred_region
        _
      $region44: #{gconv_forward.11} parent=27 // pred_fallthru
        _
    $region28: #{gconv_forward.11} parent=5 // pred_fallthru
      _
    %p383 = scmp.le.s32.totalorder 2, %s8
    // Predicated region
    $region45: #{gconv_forward.11} parent=5 // pred_check
      %p384 = pneg %p383
    $region46: #{gconv_forward.11} parent=5 // pred_check_branch
      %386 = sbr.rel (%p384) target = $region48
    $region47: #{gconv_forward.11} parent=5 // pred_region
      %s387 = ssub.s32 %s8, 2
    $region48: #{gconv_forward.11} parent=5 // pred_fallthru
      _
  $region6: #{gconv_forward.11} parent=0 // loop_footer
    %s12 = sadd.s32 1, %s8
  $region7: #{gconv_forward.11} parent=0 // loop_footer_branch
    %7 = sbr.rel target = $region3
  $region8: #{gconv_forward.11} parent=0 // loop_exit
    _

</llo_original>
